<compile_context>
chip_gen: v7x
topology: tpu7x:2x2x1
jax: 0.10.0
libtpu: 0.0.40
codegen_flags: <defaults>
</compile_context>

<pallas_src>
import functools

import jax
import jax.numpy as jnp
from jax import lax
from jax.experimental import pallas as pl
from jax.experimental.pallas import tpu as pltpu


# ----------------------------------------------------------------------------
# Shared fused compute: depthwise 3x3 (+BN bias+PReLU) -> 1x1 matmul (+BN bias
# [+PReLU]).  BN scales are pre-folded into the conv weights.
# ----------------------------------------------------------------------------
def _dsconv_compute(xv, wdw_ref, b1_ref, a1_ref, wpw_ref, b2_ref, a2_ref,
                    o_ref, *, TH, Wo, Cin, Cout, stride, dilation, relu):
    ITH = xv.shape[0]
    wdw = wdw_ref[...].astype(jnp.float32)           # (3, 3, Cin)

    # Depthwise 3x3 on the VPU.  Hoist the W-axis (sublane) slice out of the
    # kh loop: 3 shifted column views instead of 9 unaligned slices; the
    # inner kh slices only move along the leading H dim (cheap).
    acc = jnp.zeros((TH, Wo, Cin), jnp.float32)
    for kw in range(3):
        w0 = kw * dilation
        if stride == 1:
            col = lax.slice(xv, (0, w0, 0), (ITH, w0 + Wo, Cin))
        else:
            # TODO(synk): stride>1 uses a strided lax.slice on the sublane
            # axis; pre-splitting even/odd columns outside the kernel would
            # avoid it if it ever shows up as a relayout hotspot.
            col = lax.slice(xv, (0, w0, 0),
                            (ITH, w0 + (Wo - 1) * stride + 1, Cin),
                            (1, stride, 1))
        col = col.astype(jnp.float32)
        for kh in range(3):
            h0 = kh * dilation
            if stride == 1:
                patch = lax.slice(col, (h0, 0, 0), (h0 + TH, Wo, Cin))
            else:
                patch = lax.slice(col, (h0, 0, 0),
                                  (h0 + (TH - 1) * stride + 1, Wo, Cin),
                                  (stride, 1, 1))
            acc = acc + patch * wdw[kh, kw, :]

    y = acc + b1_ref[...]                            # BN1 (scale in wdw)
    y = jnp.where(y >= 0, y, a1_ref[...] * y)        # PReLU1

    # Pointwise 1x1 as an MXU matmul; operands in wpw's dtype (bf16 by
    # default), f32 accumulation.  Wo is a multiple of 8 so the reshapes are
    # layout-compatible (no relayout copy).
    wpw = wpw_ref[...]
    y2 = y.reshape(TH * Wo, Cin).astype(wpw.dtype)
    z = jnp.dot(y2, wpw, preferred_element_type=jnp.float32)
    z = z + b2_ref[...]                              # BN2 (scale in wpw)
    if relu:
        z = jnp.where(z >= 0, z, a2_ref[...] * z)    # PReLU2
    o_ref[0] = z.reshape(TH, Wo, Cout).astype(o_ref.dtype)


# ----------------------------------------------------------------------------
# R == 1 path: whole (padded) image per batch step, auto-pipelined BlockSpec.
# ----------------------------------------------------------------------------
def _kernel_blocked(x_ref, wdw_ref, b1_ref, a1_ref, wpw_ref, b2_ref, a2_ref,
                    o_ref, *, TH, Wo, Cin, Cout, stride, dilation, relu):
    _dsconv_compute(x_ref[0], wdw_ref, b1_ref, a1_ref, wpw_ref, b2_ref,
                    a2_ref, o_ref, TH=TH, Wo=Wo, Cin=Cin, Cout=Cout,
                    stride=stride, dilation=dilation, relu=relu)


# ----------------------------------------------------------------------------
# R > 1 path: input stays in HBM; each grid step DMAs its (ITH, Wp, Cin) halo
# window into a 2-deep VMEM scratch and prefetches the next row tile of the
# same batch image.  Row axis is "arbitrary" so the cross-step prefetch is
# always issued on the same core that consumes it; batch axis is "parallel".
# ----------------------------------------------------------------------------
def _kernel_manual(x_hbm, wdw_ref, b1_ref, a1_ref, wpw_ref, b2_ref, a2_ref,
                   o_ref, xbuf, sem, *, ITH, R, TH, Wo, Cin, Cout, stride,
                   dilation, relu):
    n = pl.program_id(0)
    r = pl.program_id(1)

    def start_fetch(rr, slot):
        row0 = rr * (TH * stride)
        pltpu.make_async_copy(x_hbm.at[n, pl.ds(row0, ITH)],
                              xbuf.at[slot], sem.at[slot]).start()

    # First tile of this image: blocking fetch (exposed once per image).
    @pl.when(r == 0)
    def _():
        start_fetch(0, 0)

    slot = r % 2
    pltpu.make_async_copy(x_hbm.at[0, pl.ds(0, ITH)],
                          xbuf.at[slot], sem.at[slot]).wait()

    # Prefetch the next row tile of the same image while computing this one.
    @pl.when(r + 1 < R)
    def _():
        start_fetch(r + 1, (r + 1) % 2)

    _dsconv_compute(xbuf[slot], wdw_ref, b1_ref, a1_ref, wpw_ref, b2_ref,
                    a2_ref, o_ref, TH=TH, Wo=Wo, Cin=Cin, Cout=Cout,
                    stride=stride, dilation=dilation, relu=relu)


# ----------------------------------------------------------------------------
# VMEM configuration per chip generation.
# ----------------------------------------------------------------------------
def _vmem_config():
    cap = None
    try:
        info = pltpu.get_tpu_info()
        cap = getattr(info, "vmem_capacity_bytes", None)
    except Exception:
        cap = None
    if not cap:
        cap = 64 * 1024 * 1024               # conservative (v7x per-core)
    vmem_limit = int(min(96 * 1024 * 1024, (cap * 3) // 4))
    budget = (vmem_limit * 55) // 100        # headroom for relayout temps etc.
    return vmem_limit, int(budget)


# ----------------------------------------------------------------------------
# Tile-height selection: largest row tile whose modelled footprint fits the
# budget.  Double-buffer only the DMA'd input/output blocks, count weights,
# and budget ~3x for the acc/patch/relayout intermediates.
# ----------------------------------------------------------------------------
def _pick_tile_h(Ho, Wo_pad, Cin, Cout, stride, dilation,
                 budget_bytes, max_tile_h, w_bytes):
    wp = (Wo_pad - 1) * stride + 2 * dilation + 1
    best = 1
    for th in range(1, max(1, min(Ho, max_tile_h)) + 1):
        ith = (th - 1) * stride + 2 * dilation + 1
        in_b = ith * wp * Cin * 4
        out_b = th * Wo_pad * Cout * 4
        mid_b = th * Wo_pad * Cin * 4
        tot = 2 * in_b + 2 * out_b + 2 * w_bytes + 3 * mid_b + out_b
        if tot <= budget_bytes:
            best = th
        else:
            break
    return best


# ----------------------------------------------------------------------------
# Wrapper
# ----------------------------------------------------------------------------
def dsconv3x3_forward(x_nchw, params, *, stride=1, dilation=1, relu=True,
                      matmul_dtype=jnp.bfloat16, max_tile_h=512):
    """x_nchw: (N, Cin, H, W) float32.  Returns (N, Cout, Ho, Wo)."""
    N, Cin, H, W = x_nchw.shape
    d = dilation
    Ho = (H - 1) // stride + 1               # pad == dilation, k == 3
    Wo = (W - 1) // stride + 1

    eps = 1e-5
    # ---- fold BN1 scale into depthwise weights (trace-time, zero cost) ----
    s1 = params["bn1_gamma"] * lax.rsqrt(params["bn1_var"] + eps)
    b1 = (params["bn1_beta"] - params["bn1_mean"] * s1).reshape(1, 1, Cin)
    w_dw = (params["w_dw"] * s1[None, None, :]).astype(jnp.float32)
    a1 = params["prelu1"].reshape(1, 1, Cin)

    # ---- fold BN2 scale into pointwise weights, cast to matmul dtype ----
    w_pw = params["w_pw"]
    Cout = w_pw.shape[1]
    s2 = params["bn2_gamma"] * lax.rsqrt(params["bn2_var"] + eps)
    b2 = (params["bn2_beta"] - params["bn2_mean"] * s2).reshape(1, Cout)
    w_pw = (w_pw * s2[None, :]).astype(matmul_dtype)
    a2 = params["prelu2"].reshape(1, Cout)

    # ---- spatial tiling over output rows ----
    vmem_limit, budget = _vmem_config()
    Wo_pad = -(-Wo // 8) * 8                 # sublane-aligned output width
    w_bytes = ((3 * 3 * Cin + 2 * Cin) * 4
               + Cin * Cout * jnp.dtype(matmul_dtype).itemsize
               + 2 * Cout * 4)
    TH = _pick_tile_h(Ho, Wo_pad, Cin, Cout, stride, dilation,
                      budget, min(max_tile_h, Ho), w_bytes)
    R = -(-Ho // TH)                         # number of row tiles
    Ho_pad = R * TH
    ITH = (TH - 1) * stride + 2 * d + 1      # input rows per tile (halo)
    Hp = (Ho_pad - 1) * stride + 2 * d + 1   # padded rows needed overall
    Wp = (Wo_pad - 1) * stride + 2 * d + 1   # padded cols needed overall

    # NCHW -> NHWC and zero-pad (one fused XLA copy before the kernel).
    # TODO(synk): keep the model NHWC end-to-end and fold the zero-pad into
    # the halo DMA to remove this pass entirely.
    x = jnp.transpose(x_nchw, (0, 2, 3, 1))
    pad_b = max(Hp - H - d, 0)
    pad_r = max(Wp - W - d, 0)
    x_pad = jnp.pad(x, ((0, 0), (d, pad_b), (d, pad_r), (0, 0)))[:, :Hp, :Wp, :]

    common_in_specs = [
        pl.BlockSpec((3, 3, Cin), lambda n, r: (0, 0, 0)),
        pl.BlockSpec((1, 1, Cin), lambda n, r: (0, 0, 0)),
        pl.BlockSpec((1, 1, Cin), lambda n, r: (0, 0, 0)),
        pl.BlockSpec((Cin, Cout), lambda n, r: (0, 0)),
        pl.BlockSpec((1, Cout), lambda n, r: (0, 0)),
        pl.BlockSpec((1, Cout), lambda n, r: (0, 0)),
    ]
    out_spec = pl.BlockSpec((1, TH, Wo_pad, Cout), lambda n, r: (n, r, 0, 0))
    out_shape = jax.ShapeDtypeStruct((N, Ho_pad, Wo_pad, Cout), x_nchw.dtype)
    compute_kw = dict(TH=TH, Wo=Wo_pad, Cin=Cin, Cout=Cout, stride=stride,
                      dilation=dilation, relu=relu)
    cparams = pltpu.CompilerParams(
        dimension_semantics=("parallel", "arbitrary"),
        vmem_limit_bytes=vmem_limit)

    if R == 1:
        # Whole image per batch step: plain Blocked spec, auto-pipelined.
        kern = functools.partial(_kernel_blocked, **compute_kw)
        out = pl.pallas_call(
            kern, out_shape=out_shape, grid=(N, 1),
            in_specs=[pl.BlockSpec((1, ITH, Wp, Cin),
                                   lambda n, r: (n, 0, 0, 0))] + common_in_specs,
            out_specs=out_spec,
            compiler_params=cparams,
        )(x_pad, w_dw, b1, a1, w_pw, b2, a2)
    else:
        # Row-tiled path: overlapping halo windows -> manual double-buffered
        # DMA from HBM (no wrapper-side halo gather pass).
        kern = functools.partial(_kernel_manual, ITH=ITH, R=R, **compute_kw)
        out = pl.pallas_call(
            kern, out_shape=out_shape, grid=(N, R),
            in_specs=[pl.BlockSpec(memory_space=pl.ANY)] + common_in_specs,
            out_specs=out_spec,
            scratch_shapes=[pltpu.VMEM((2, ITH, Wp, Cin), x_pad.dtype),
                            pltpu.SemaphoreType.DMA((2,))],
            compiler_params=cparams,
        )(x_pad, w_dw, b1, a1, w_pw, b2, a2)

    out = out[:, :Ho, :Wo, :]                # crop row/col padding
    return jnp.transpose(out, (0, 3, 1, 2))  # NHWC -> NCHW


# ----------------------------------------------------------------------------
# Pure-JAX reference (same math, via lax.conv_general_dilated) for validation
# ----------------------------------------------------------------------------
def dsconv3x3_reference(x_nchw, params, *, stride=1, dilation=1, relu=True):
    eps = 1e-5
    Cin = x_nchw.shape[1]
    # depthwise 3x3
    w_dw = jnp.transpose(params["w_dw"], (2, 0, 1))[:, None, :, :]  # (Cin,1,3,3)
    y = lax.conv_general_dilated(
        x_nchw, w_dw, window_strides=(stride, stride),
        padding=((dilation, dilation), (dilation, dilation)),
        rhs_dilation=(dilation, dilation), feature_group_count=Cin,
        dimension_numbers=("NCHW", "OIHW", "NCHW"))
    s1 = (params["bn1_gamma"] / jnp.sqrt(params["bn1_var"] + eps))
    b1 = params["bn1_beta"] - params["bn1_mean"] * s1
    y = y * s1[None, :, None, None] + b1[None, :, None, None]
    a1 = params["prelu1"][None, :, None, None]
    y = jnp.where(y >= 0, y, a1 * y)
    # pointwise 1x1
    w_pw = jnp.transpose(params["w_pw"], (1, 0))[:, :, None, None]  # (Cout,Cin,1,1)
    z = lax.conv_general_dilated(
        y, w_pw, window_strides=(1, 1), padding=((0, 0), (0, 0)),
        dimension_numbers=("NCHW", "OIHW", "NCHW"))
    s2 = (params["bn2_gamma"] / jnp.sqrt(params["bn2_var"] + eps))
    b2 = params["bn2_beta"] - params["bn2_mean"] * s2
    z = z * s2[None, :, None, None] + b2[None, :, None, None]
    if relu:
        a2 = params["prelu2"][None, :, None, None]
        z = jnp.where(z >= 0, z, a2 * z)
    return z


def make_params(key, Cin, Cout):
    ks = jax.random.split(key, 12)
    return {
        # depthwise weight: PyTorch (Cin,1,3,3) -> kernel layout (3,3,Cin)
        "w_dw": 0.2 * jax.random.normal(ks[0], (3, 3, Cin), jnp.float32),
        "bn1_gamma": 1.0 + 0.1 * jax.random.normal(ks[1], (Cin,), jnp.float32),
        "bn1_beta": 0.1 * jax.random.normal(ks[2], (Cin,), jnp.float32),
        "bn1_mean": 0.1 * jax.random.normal(ks[3], (Cin,), jnp.float32),
        "bn1_var": 0.5 + jnp.abs(jax.random.normal(ks[4], (Cin,), jnp.float32)),
        "prelu1": jnp.full((Cin,), 0.25, jnp.float32),
        # pointwise weight: PyTorch (Cout,Cin,1,1) -> kernel layout (Cin,Cout)
        "w_pw": 0.2 * jax.random.normal(ks[5], (Cin, Cout), jnp.float32),
        "bn2_gamma": 1.0 + 0.1 * jax.random.normal(ks[6], (Cout,), jnp.float32),
        "bn2_beta": 0.1 * jax.random.normal(ks[7], (Cout,), jnp.float32),
        "bn2_mean": 0.1 * jax.random.normal(ks[8], (Cout,), jnp.float32),
        "bn2_var": 0.5 + jnp.abs(jax.random.normal(ks[9], (Cout,), jnp.float32)),
        "prelu2": jnp.full((Cout,), 0.25, jnp.float32),
    }


if __name__ == "__main__":
    key = jax.random.PRNGKey(0)
    k_x, k_p = jax.random.split(key)

    N, Cin, H, W = 2, 8, 16, 16
    Cout = 16

    x = jax.random.normal(k_x, (N, Cin, H, W), jnp.float32)   # NCHW like PyTorch
    params = make_params(k_p, Cin, Cout)

    # config 1: default DSConv3x3 (stride=1, dilation=1, relu=True), f32
    # matmul operands -> strict tolerance, R==1 blocked path.
    out = dsconv3x3_forward(x, params, stride=1, dilation=1, relu=True,
                            matmul_dtype=jnp.float32)
    out = jax.block_until_ready(out)
    ref = dsconv3x3_reference(x, params, stride=1, dilation=1, relu=True)
    ref = jax.block_until_ready(ref)
    assert out.shape == (N, Cout, H, W), out.shape
    assert jnp.allclose(out, ref, rtol=2e-3, atol=2e-3), float(
        jnp.max(jnp.abs(out - ref)))

    # config 2: dilation=2, relu=False, default bf16 matmul operands
    # (f32 accumulation) -> exercises dilation halo + no 2nd PReLU.
    out2 = dsconv3x3_forward(x, params, stride=1, dilation=2, relu=False)
    out2 = jax.block_until_ready(out2)
    ref2 = dsconv3x3_reference(x, params, stride=1, dilation=2, relu=False)
    ref2 = jax.block_until_ready(ref2)
    assert out2.shape == (N, Cout, H, W), out2.shape
    assert jnp.allclose(out2, ref2, rtol=2e-2, atol=2e-2), float(
        jnp.max(jnp.abs(out2 - ref2)))

    # config 3: force small row tiles (max_tile_h=4 -> R=4) to exercise the
    # manual halo-DMA double-buffer path (memory_space=pl.ANY input).
    out3 = dsconv3x3_forward(x, params, stride=1, dilation=1, relu=True,
                             max_tile_h=4)
    out3 = jax.block_until_ready(out3)
    ref3 = dsconv3x3_reference(x, params, stride=1, dilation=1, relu=True)
    ref3 = jax.block_until_ready(ref3)
    assert out3.shape == (N, Cout, H, W), out3.shape
    assert jnp.allclose(out3, ref3, rtol=2e-2, atol=2e-2), float(
        jnp.max(jnp.abs(out3 - ref3)))

    print("KERNEL_OK")
</pallas_src>

<mosaic_0001>
module attributes {stable_mosaic.version = 11 : i64} {
  func.func @_kernel_blocked(%arg0: i32, %arg1: i32, %arg2: memref<1x18x18x8xf32, #tpu.memory_space<vmem>>, %arg3: memref<3x3x8xf32, #tpu.memory_space<vmem>>, %arg4: memref<1x1x8xf32, #tpu.memory_space<vmem>>, %arg5: memref<1x1x8xf32, #tpu.memory_space<vmem>>, %arg6: memref<8x16xf32, #tpu.memory_space<vmem>>, %arg7: memref<1x16xf32, #tpu.memory_space<vmem>>, %arg8: memref<1x16xf32, #tpu.memory_space<vmem>>, %arg9: memref<1x16x16x16xf32, #tpu.memory_space<vmem>>) attributes {dimension_semantics = [#tpu.dimension_semantics<parallel>, #tpu.dimension_semantics<arbitrary>], iteration_bounds = array<i64: 2, 1>, scalar_prefetch = 0 : i64, scratch_operands = 0 : i64, tpu.core_type = #tpu.core_type<tc>, window_params = [{transform_indices = @transform_0, window_bounds = array<i64: 1, 18, 18, 8>}, {pipeline_mode = #tpu.pipeline_mode<synchronous>, transform_indices = @transform_1, window_bounds = array<i64: 3, 3, 8>}, {pipeline_mode = #tpu.pipeline_mode<synchronous>, transform_indices = @transform_2, window_bounds = array<i64: 1, 1, 8>}, {pipeline_mode = #tpu.pipeline_mode<synchronous>, transform_indices = @transform_3, window_bounds = array<i64: 1, 1, 8>}, {pipeline_mode = #tpu.pipeline_mode<synchronous>, transform_indices = @transform_4, window_bounds = array<i64: 8, 16>}, {pipeline_mode = #tpu.pipeline_mode<synchronous>, transform_indices = @transform_5, window_bounds = array<i64: 1, 16>}, {pipeline_mode = #tpu.pipeline_mode<synchronous>, transform_indices = @transform_6, window_bounds = array<i64: 1, 16>}, {transform_indices = @transform_7, window_bounds = array<i64: 1, 16, 16, 16>}]} {
    %c0 = arith.constant 0 : index
    %c0_0 = arith.constant 0 : index
    %c0_1 = arith.constant 0 : index
    %c0_2 = arith.constant 0 : index
    %0 = vector.load %arg2[%c0, %c0_0, %c0_1, %c0_2] : memref<1x18x18x8xf32, #tpu.memory_space<vmem>>, vector<1x18x18x8xf32>
    %1 = vector.shape_cast %0 : vector<1x18x18x8xf32> to vector<18x18x8xf32>
    %c0_3 = arith.constant 0 : index
    %c0_4 = arith.constant 0 : index
    %c0_5 = arith.constant 0 : index
    %2 = vector.load %arg3[%c0_3, %c0_4, %c0_5] : memref<3x3x8xf32, #tpu.memory_space<vmem>>, vector<3x3x8xf32>
    %cst = arith.constant 0.000000e+00 : f32
    %3 = vector.broadcast %cst : f32 to vector<16x16x8xf32>
    %4 = vector.extract_strided_slice %1 {offsets = [0, 0, 0], sizes = [18, 16, 8], strides = [1, 1, 1]} : vector<18x18x8xf32> to vector<18x16x8xf32>
    %5 = vector.extract_strided_slice %4 {offsets = [0, 0, 0], sizes = [16, 16, 8], strides = [1, 1, 1]} : vector<18x16x8xf32> to vector<16x16x8xf32>
    %6 = vector.extract_strided_slice %2 {offsets = [0, 0, 0], sizes = [1, 1, 8], strides = [1, 1, 1]} : vector<3x3x8xf32> to vector<1x1x8xf32>
    %7 = vector.shape_cast %6 : vector<1x1x8xf32> to vector<8xf32>
    %8 = vector.shape_cast %7 : vector<8xf32> to vector<1x1x8xf32>
    %9 = vector.broadcast %8 : vector<1x1x8xf32> to vector<16x16x8xf32>
    %10 = arith.mulf %5, %9 : vector<16x16x8xf32>
    %11 = arith.addf %3, %10 : vector<16x16x8xf32>
    %12 = vector.extract_strided_slice %4 {offsets = [1, 0, 0], sizes = [16, 16, 8], strides = [1, 1, 1]} : vector<18x16x8xf32> to vector<16x16x8xf32>
    %13 = vector.extract_strided_slice %2 {offsets = [1, 0, 0], sizes = [1, 1, 8], strides = [1, 1, 1]} : vector<3x3x8xf32> to vector<1x1x8xf32>
    %14 = vector.shape_cast %13 : vector<1x1x8xf32> to vector<8xf32>
    %15 = vector.shape_cast %14 : vector<8xf32> to vector<1x1x8xf32>
    %16 = vector.broadcast %15 : vector<1x1x8xf32> to vector<16x16x8xf32>
    %17 = arith.mulf %12, %16 : vector<16x16x8xf32>
    %18 = arith.addf %11, %17 : vector<16x16x8xf32>
    %19 = vector.extract_strided_slice %4 {offsets = [2, 0, 0], sizes = [16, 16, 8], strides = [1, 1, 1]} : vector<18x16x8xf32> to vector<16x16x8xf32>
    %20 = vector.extract_strided_slice %2 {offsets = [2, 0, 0], sizes = [1, 1, 8], strides = [1, 1, 1]} : vector<3x3x8xf32> to vector<1x1x8xf32>
    %21 = vector.shape_cast %20 : vector<1x1x8xf32> to vector<8xf32>
    %22 = vector.shape_cast %21 : vector<8xf32> to vector<1x1x8xf32>
    %23 = vector.broadcast %22 : vector<1x1x8xf32> to vector<16x16x8xf32>
    %24 = arith.mulf %19, %23 : vector<16x16x8xf32>
    %25 = arith.addf %18, %24 : vector<16x16x8xf32>
    %26 = vector.extract_strided_slice %1 {offsets = [0, 1, 0], sizes = [18, 16, 8], strides = [1, 1, 1]} : vector<18x18x8xf32> to vector<18x16x8xf32>
    %27 = vector.extract_strided_slice %26 {offsets = [0, 0, 0], sizes = [16, 16, 8], strides = [1, 1, 1]} : vector<18x16x8xf32> to vector<16x16x8xf32>
    %28 = vector.extract_strided_slice %2 {offsets = [0, 1, 0], sizes = [1, 1, 8], strides = [1, 1, 1]} : vector<3x3x8xf32> to vector<1x1x8xf32>
    %29 = vector.shape_cast %28 : vector<1x1x8xf32> to vector<8xf32>
    %30 = vector.shape_cast %29 : vector<8xf32> to vector<1x1x8xf32>
    %31 = vector.broadcast %30 : vector<1x1x8xf32> to vector<16x16x8xf32>
    %32 = arith.mulf %27, %31 : vector<16x16x8xf32>
    %33 = arith.addf %25, %32 : vector<16x16x8xf32>
    %34 = vector.extract_strided_slice %26 {offsets = [1, 0, 0], sizes = [16, 16, 8], strides = [1, 1, 1]} : vector<18x16x8xf32> to vector<16x16x8xf32>
    %35 = vector.extract_strided_slice %2 {offsets = [1, 1, 0], sizes = [1, 1, 8], strides = [1, 1, 1]} : vector<3x3x8xf32> to vector<1x1x8xf32>
    %36 = vector.shape_cast %35 : vector<1x1x8xf32> to vector<8xf32>
    %37 = vector.shape_cast %36 : vector<8xf32> to vector<1x1x8xf32>
    %38 = vector.broadcast %37 : vector<1x1x8xf32> to vector<16x16x8xf32>
    %39 = arith.mulf %34, %38 : vector<16x16x8xf32>
    %40 = arith.addf %33, %39 : vector<16x16x8xf32>
    %41 = vector.extract_strided_slice %26 {offsets = [2, 0, 0], sizes = [16, 16, 8], strides = [1, 1, 1]} : vector<18x16x8xf32> to vector<16x16x8xf32>
    %42 = vector.extract_strided_slice %2 {offsets = [2, 1, 0], sizes = [1, 1, 8], strides = [1, 1, 1]} : vector<3x3x8xf32> to vector<1x1x8xf32>
    %43 = vector.shape_cast %42 : vector<1x1x8xf32> to vector<8xf32>
    %44 = vector.shape_cast %43 : vector<8xf32> to vector<1x1x8xf32>
    %45 = vector.broadcast %44 : vector<1x1x8xf32> to vector<16x16x8xf32>
    %46 = arith.mulf %41, %45 : vector<16x16x8xf32>
    %47 = arith.addf %40, %46 : vector<16x16x8xf32>
    %48 = vector.extract_strided_slice %1 {offsets = [0, 2, 0], sizes = [18, 16, 8], strides = [1, 1, 1]} : vector<18x18x8xf32> to vector<18x16x8xf32>
    %49 = vector.extract_strided_slice %48 {offsets = [0, 0, 0], sizes = [16, 16, 8], strides = [1, 1, 1]} : vector<18x16x8xf32> to vector<16x16x8xf32>
    %50 = vector.extract_strided_slice %2 {offsets = [0, 2, 0], sizes = [1, 1, 8], strides = [1, 1, 1]} : vector<3x3x8xf32> to vector<1x1x8xf32>
    %51 = vector.shape_cast %50 : vector<1x1x8xf32> to vector<8xf32>
    %52 = vector.shape_cast %51 : vector<8xf32> to vector<1x1x8xf32>
    %53 = vector.broadcast %52 : vector<1x1x8xf32> to vector<16x16x8xf32>
    %54 = arith.mulf %49, %53 : vector<16x16x8xf32>
    %55 = arith.addf %47, %54 : vector<16x16x8xf32>
    %56 = vector.extract_strided_slice %48 {offsets = [1, 0, 0], sizes = [16, 16, 8], strides = [1, 1, 1]} : vector<18x16x8xf32> to vector<16x16x8xf32>
    %57 = vector.extract_strided_slice %2 {offsets = [1, 2, 0], sizes = [1, 1, 8], strides = [1, 1, 1]} : vector<3x3x8xf32> to vector<1x1x8xf32>
    %58 = vector.shape_cast %57 : vector<1x1x8xf32> to vector<8xf32>
    %59 = vector.shape_cast %58 : vector<8xf32> to vector<1x1x8xf32>
    %60 = vector.broadcast %59 : vector<1x1x8xf32> to vector<16x16x8xf32>
    %61 = arith.mulf %56, %60 : vector<16x16x8xf32>
    %62 = arith.addf %55, %61 : vector<16x16x8xf32>
    %63 = vector.extract_strided_slice %48 {offsets = [2, 0, 0], sizes = [16, 16, 8], strides = [1, 1, 1]} : vector<18x16x8xf32> to vector<16x16x8xf32>
    %64 = vector.extract_strided_slice %2 {offsets = [2, 2, 0], sizes = [1, 1, 8], strides = [1, 1, 1]} : vector<3x3x8xf32> to vector<1x1x8xf32>
    %65 = vector.shape_cast %64 : vector<1x1x8xf32> to vector<8xf32>
    %66 = vector.shape_cast %65 : vector<8xf32> to vector<1x1x8xf32>
    %67 = vector.broadcast %66 : vector<1x1x8xf32> to vector<16x16x8xf32>
    %68 = arith.mulf %63, %67 : vector<16x16x8xf32>
    %69 = arith.addf %62, %68 : vector<16x16x8xf32>
    %c0_6 = arith.constant 0 : index
    %c0_7 = arith.constant 0 : index
    %c0_8 = arith.constant 0 : index
    %70 = vector.load %arg4[%c0_6, %c0_7, %c0_8] : memref<1x1x8xf32, #tpu.memory_space<vmem>>, vector<1x1x8xf32>
    %71 = vector.broadcast %70 : vector<1x1x8xf32> to vector<16x16x8xf32>
    %72 = arith.addf %69, %71 : vector<16x16x8xf32>
    %cst_9 = arith.constant 0.000000e+00 : f32
    %73 = vector.broadcast %cst_9 : f32 to vector<16x16x8xf32>
    %74 = arith.cmpf oge, %72, %73 : vector<16x16x8xf32>
    %c0_10 = arith.constant 0 : index
    %c0_11 = arith.constant 0 : index
    %c0_12 = arith.constant 0 : index
    %75 = vector.load %arg5[%c0_10, %c0_11, %c0_12] : memref<1x1x8xf32, #tpu.memory_space<vmem>>, vector<1x1x8xf32>
    %76 = vector.broadcast %75 : vector<1x1x8xf32> to vector<16x16x8xf32>
    %77 = arith.mulf %76, %72 : vector<16x16x8xf32>
    %78 = arith.select %74, %72, %77 : vector<16x16x8xi1>, vector<16x16x8xf32>
    %c0_13 = arith.constant 0 : index
    %c0_14 = arith.constant 0 : index
    %79 = vector.load %arg6[%c0_13, %c0_14] : memref<8x16xf32, #tpu.memory_space<vmem>>, vector<8x16xf32>
    %80 = vector.shape_cast %78 : vector<16x16x8xf32> to vector<256x8xf32>
    %cst_15 = arith.constant dense<0.000000e+00> : vector<256x16xf32>
    %81 = tpu.matmul %80, %79, %cst_15 {dimension_numbers = #tpu.dot_dimension_numbers<[1], [0], [0], [1], [0, 0, 1, 1], [], []>} : vector<256x8xf32>, vector<8x16xf32>, vector<256x16xf32> -> vector<256x16xf32>
    %c0_16 = arith.constant 0 : index
    %c0_17 = arith.constant 0 : index
    %82 = vector.load %arg7[%c0_16, %c0_17] : memref<1x16xf32, #tpu.memory_space<vmem>>, vector<1x16xf32>
    %83 = vector.broadcast %82 : vector<1x16xf32> to vector<256x16xf32>
    %84 = arith.addf %81, %83 : vector<256x16xf32>
    %cst_18 = arith.constant 0.000000e+00 : f32
    %85 = vector.broadcast %cst_18 : f32 to vector<256x16xf32>
    %86 = arith.cmpf oge, %84, %85 : vector<256x16xf32>
    %c0_19 = arith.constant 0 : index
    %c0_20 = arith.constant 0 : index
    %87 = vector.load %arg8[%c0_19, %c0_20] : memref<1x16xf32, #tpu.memory_space<vmem>>, vector<1x16xf32>
    %88 = vector.broadcast %87 : vector<1x16xf32> to vector<256x16xf32>
    %89 = arith.mulf %88, %84 : vector<256x16xf32>
    %90 = arith.select %86, %84, %89 : vector<256x16xi1>, vector<256x16xf32>
    %91 = vector.shape_cast %90 : vector<256x16xf32> to vector<16x16x16xf32>
    %c0_21 = arith.constant 0 : index
    %c0_22 = arith.constant 0 : index
    %c0_23 = arith.constant 0 : index
    %c0_24 = arith.constant 0 : index
    %92 = vector.load %arg9[%c0_21, %c0_22, %c0_23, %c0_24] : memref<1x16x16x16xf32, #tpu.memory_space<vmem>>, vector<1x16x16x16xf32>
    %93 = vector.shape_cast %92 : vector<1x16x16x16xf32> to vector<16x16x16xf32>
    %94 = vector.shape_cast %91 : vector<16x16x16xf32> to vector<1x16x16x16xf32>
    tpu.vector_store %arg9[%c0_21, %c0_22, %c0_23, %c0_24], %94 {strides = array<i32>} : memref<1x16x16x16xf32, #tpu.memory_space<vmem>>, vector<1x16x16x16xf32>,
    return
  }
  func.func @transform_0(%arg0: i32, %arg1: i32) -> (i32, i32, i32, i32) {
    %c0_i32 = arith.constant 0 : i32
    %c0_i32_0 = arith.constant 0 : i32
    %c0_i32_1 = arith.constant 0 : i32
    %c0_i32_2 = arith.constant 0 : i32
    return %arg0, %c0_i32, %c0_i32_0, %c0_i32_1 : i32, i32, i32, i32
  }
  func.func @transform_1(%arg0: i32, %arg1: i32) -> (i32, i32, i32) {
    %c0_i32 = arith.constant 0 : i32
    %c0_i32_0 = arith.constant 0 : i32
    %c0_i32_1 = arith.constant 0 : i32
    %c0_i32_2 = arith.constant 0 : i32
    return %c0_i32, %c0_i32_0, %c0_i32_1 : i32, i32, i32
  }
  func.func @transform_2(%arg0: i32, %arg1: i32) -> (i32, i32, i32) {
    %c0_i32 = arith.constant 0 : i32
    %c0_i32_0 = arith.constant 0 : i32
    %c0_i32_1 = arith.constant 0 : i32
    %c0_i32_2 = arith.constant 0 : i32
    return %c0_i32, %c0_i32_0, %c0_i32_1 : i32, i32, i32
  }
  func.func @transform_3(%arg0: i32, %arg1: i32) -> (i32, i32, i32) {
    %c0_i32 = arith.constant 0 : i32
    %c0_i32_0 = arith.constant 0 : i32
    %c0_i32_1 = arith.constant 0 : i32
    %c0_i32_2 = arith.constant 0 : i32
    return %c0_i32, %c0_i32_0, %c0_i32_1 : i32, i32, i32
  }
  func.func @transform_4(%arg0: i32, %arg1: i32) -> (i32, i32) {
    %c0_i32 = arith.constant 0 : i32
    %c0_i32_0 = arith.constant 0 : i32
    %c0_i32_1 = arith.constant 0 : i32
    return %c0_i32, %c0_i32_0 : i32, i32
  }
  func.func @transform_5(%arg0: i32, %arg1: i32) -> (i32, i32) {
    %c0_i32 = arith.constant 0 : i32
    %c0_i32_0 = arith.constant 0 : i32
    %c0_i32_1 = arith.constant 0 : i32
    return %c0_i32, %c0_i32_0 : i32, i32
  }
  func.func @transform_6(%arg0: i32, %arg1: i32) -> (i32, i32) {
    %c0_i32 = arith.constant 0 : i32
    %c0_i32_0 = arith.constant 0 : i32
    %c0_i32_1 = arith.constant 0 : i32
    return %c0_i32, %c0_i32_0 : i32, i32
  }
  func.func @transform_7(%arg0: i32, %arg1: i32) -> (i32, i32, i32, i32) {
    %c0_i32 = arith.constant 0 : i32
    %c0_i32_0 = arith.constant 0 : i32
    %c0_i32_1 = arith.constant 0 : i32
    return %arg0, %arg1, %c0_i32, %c0_i32_0 : i32, i32, i32, i32
  }
}

</mosaic_0001>

<llo_original>
// kernel: tpu_custom_call.1
$region0: #{tpu_custom_call.1}
  #allocation0 [shape = 'u32[]', space=smem, size = 0x4, offset = 0x4, fixed_abs, tag = 'smem constant byte address 0x4 - core index']
  #allocation1 [shape = 'u32[144,128]{1,0:T(1,128)}', space=vmem, size = 0x12000, scoped, tag = 'internal scratch']
  %s0 = inlined_call_operand.vmem [shape: f32[2,18,18,8], index: 0, kind: input, shape index: {}]
  %s1 = inlined_call_operand.vmem [shape: f32[3,3,8], index: 1, kind: input, shape index: {}]
  %s2 = inlined_call_operand.vmem [shape: f32[1,1,8], index: 2, kind: input, shape index: {}]
  %s3 = inlined_call_operand.vmem [shape: f32[1,1,8], index: 3, kind: input, shape index: {}]
  %s4 = inlined_call_operand.vmem [shape: f32[8,16], index: 4, kind: input, shape index: {}]
  %s5 = inlined_call_operand.vmem [shape: f32[1,16], index: 5, kind: input, shape index: {}]
  %s6 = inlined_call_operand.vmem [shape: f32[1,16], index: 6, kind: input, shape index: {}]
  %s7 = inlined_call_operand.hbm [shape: f32[2,16,16,16], index: 7, kind: output, shape index: {}]
  %s8 = sld [smem:[#allocation0]]
  $region61: #{tpu_custom_call.1} parent=0
    _
  %s10 = ssub.s32 1, %s8
  %s11 = scalar_select 0, %s10, %s8
  $region1: #{tpu_custom_call.1} parent=0
    #allocation2 [shape = 'u8[262144]{0}', space=vmem, size = 0x40000, scoped, tag = 'output window, operand 0']
    #allocation3 [shape = 's32[2]{0}', space=sflag, size = 0x8, scoped, tag = 'scoped memory for tpu_custom_call.1']
    %12 = vsyncpa [#allocation3], 0
    %s13 = scalar_lea.sflag [#allocation3], 1
    %14 = vsyncpa %s13, 0
    loop: start=0, step=1, limit=4
    $region2: #{tpu_custom_call.1} parent=1 // loop_pre_header
      _
    $region3: #{tpu_custom_call.1} parent=1 // loop_header
      %s16 = sphi 0, %s20
      %p17 = scmp.ge.s32.totalorder %s16, 4
      %s23 = sphi 0, %s35
      %s24 = sphi 0, %s31
      %s25 = sphi 0, %s23
      %s26 = sphi 0, %s24
      %s27 = sphi 0, %s25
      %s28 = sphi 0, %s26
      %s38 = sphi 0, %s40
      %s41 = sphi 0, %s38
      %s42 = sphi 0, %s41
      %s58 = sphi 0, %s42
      %s62 = sphi 0, %s62
      %s64 = sphi 0, %s62
      %s65 = sphi 0, %s64
      %s79 = sphi 0, %s65
      %s83 = sphi 0, %s83
      %s85 = sphi 0, %s83
      %s86 = sphi 0, %s85
      %s100 = sphi 0, %s86
      %s104 = sphi 0, %s104
      %s106 = sphi 0, %s104
      %s107 = sphi 0, %s106
      %s121 = sphi 0, %s107
      %s125 = sphi 0, %s125
      %s127 = sphi 0, %s125
      %s128 = sphi 0, %s127
      %s142 = sphi 0, %s128
      %s146 = sphi 0, %s146
      %s148 = sphi 0, %s146
      %s149 = sphi 0, %s148
      %s163 = sphi 0, %s149
      %s167 = sphi 0, %s167
      %s169 = sphi 0, %s167
      %s170 = sphi 0, %s169
      %s184 = sphi 0, %s170
      %s192 = sphi 0, %s194
      %s195 = sphi 0, %s192
      %s196 = sphi 0, %s195
      %s212 = sphi 0, %s196
    $region4: #{tpu_custom_call.1} parent=1 // loop_header_branch
      %19 = sbr.rel (%p17) target = $region8
    $region5: #{tpu_custom_call.1} parent=1 // loop_body
      %s21 = ssub.s32 %s16, 1
      %s22 = ssub.s32 %s16, 2
      %s29 = sadd.s32 1, %s24
      %p30 = scmp.ge.s32.totalorder %s29, 1
      %s31 = scalar_select %p30, 0, %s29
      %s32 = sadd.s32 1, %s23
      %s33 = scalar_select %p30, %s32, %s23
      %p34 = scmp.ge.s32.totalorder %s33, 2
      %s35 = scalar_select %p34, 0, %s33
      %s36 = ssub.s32 %s23, %s35
      %p37 = scmp.eq.s32.totalorder %s36, 0
      %s39 = sadd.s32 %s38, 1
      %s40 = scalar_select %p37, %s38, %s39
      %p43 = pneg %p37
      %p44 = scmp.eq.s32.totalorder %s16, 1
      %p45 = por %p43, %p44
      %p46 = scmp.ne.s32.totalorder %s38, %s41
      %p47 = scmp.eq.s32.totalorder %s16, 0
      %p48 = por %p46, %p47
      %p49 = scmp.ne.s32.totalorder %s38, %s41
      %p50 = scmp.eq.s32.totalorder %s21, 1
      %p51 = por %p49, %p50
      %p52 = scmp.ne.s32.totalorder %s41, %s42
      %p53 = scmp.eq.s32.totalorder %s21, 0
      %p54 = por %p52, %p53
      %p55 = scmp.ne.s32.totalorder %s41, %s42
      %p56 = scmp.eq.s32.totalorder %s22, 1
      %p57 = por %p55, %p56
      %p59 = scmp.ne.s32.totalorder %s42, %s58
      %p60 = scmp.eq.s32.totalorder %s22, 0
      %p61 = por %p59, %p60
      %s63 = sadd.s32 %s62, 1
      %p66 = scmp.eq.s32.totalorder %s16, 1
      %p67 = scmp.ne.s32.totalorder %s62, %s64
      %p68 = scmp.eq.s32.totalorder %s16, 0
      %p69 = por %p67, %p68
      %p70 = scmp.ne.s32.totalorder %s62, %s64
      %p71 = scmp.eq.s32.totalorder %s21, 1
      %p72 = por %p70, %p71
      %p73 = scmp.ne.s32.totalorder %s64, %s65
      %p74 = scmp.eq.s32.totalorder %s21, 0
      %p75 = por %p73, %p74
      %p76 = scmp.ne.s32.totalorder %s64, %s65
      %p77 = scmp.eq.s32.totalorder %s22, 1
      %p78 = por %p76, %p77
      %p80 = scmp.ne.s32.totalorder %s65, %s79
      %p81 = scmp.eq.s32.totalorder %s22, 0
      %p82 = por %p80, %p81
      %s84 = sadd.s32 %s83, 1
      %p87 = scmp.eq.s32.totalorder %s16, 1
      %p88 = scmp.ne.s32.totalorder %s83, %s85
      %p89 = scmp.eq.s32.totalorder %s16, 0
      %p90 = por %p88, %p89
      %p91 = scmp.ne.s32.totalorder %s83, %s85
      %p92 = scmp.eq.s32.totalorder %s21, 1
      %p93 = por %p91, %p92
      %p94 = scmp.ne.s32.totalorder %s85, %s86
      %p95 = scmp.eq.s32.totalorder %s21, 0
      %p96 = por %p94, %p95
      %p97 = scmp.ne.s32.totalorder %s85, %s86
      %p98 = scmp.eq.s32.totalorder %s22, 1
      %p99 = por %p97, %p98
      %p101 = scmp.ne.s32.totalorder %s86, %s100
      %p102 = scmp.eq.s32.totalorder %s22, 0
      %p103 = por %p101, %p102
      %s105 = sadd.s32 %s104, 1
      %p108 = scmp.eq.s32.totalorder %s16, 1
      %p109 = scmp.ne.s32.totalorder %s104, %s106
      %p110 = scmp.eq.s32.totalorder %s16, 0
      %p111 = por %p109, %p110
      %p112 = scmp.ne.s32.totalorder %s104, %s106
      %p113 = scmp.eq.s32.totalorder %s21, 1
      %p114 = por %p112, %p113
      %p115 = scmp.ne.s32.totalorder %s106, %s107
      %p116 = scmp.eq.s32.totalorder %s21, 0
      %p117 = por %p115, %p116
      %p118 = scmp.ne.s32.totalorder %s106, %s107
      %p119 = scmp.eq.s32.totalorder %s22, 1
      %p120 = por %p118, %p119
      %p122 = scmp.ne.s32.totalorder %s107, %s121
      %p123 = scmp.eq.s32.totalorder %s22, 0
      %p124 = por %p122, %p123
      %s126 = sadd.s32 %s125, 1
      %p129 = scmp.eq.s32.totalorder %s16, 1
      %p130 = scmp.ne.s32.totalorder %s125, %s127
      %p131 = scmp.eq.s32.totalorder %s16, 0
      %p132 = por %p130, %p131
      %p133 = scmp.ne.s32.totalorder %s125, %s127
      %p134 = scmp.eq.s32.totalorder %s21, 1
      %p135 = por %p133, %p134
      %p136 = scmp.ne.s32.totalorder %s127, %s128
      %p137 = scmp.eq.s32.totalorder %s21, 0
      %p138 = por %p136, %p137
      %p139 = scmp.ne.s32.totalorder %s127, %s128
      %p140 = scmp.eq.s32.totalorder %s22, 1
      %p141 = por %p139, %p140
      %p143 = scmp.ne.s32.totalorder %s128, %s142
      %p144 = scmp.eq.s32.totalorder %s22, 0
      %p145 = por %p143, %p144
      %s147 = sadd.s32 %s146, 1
      %p150 = scmp.eq.s32.totalorder %s16, 1
      %p151 = scmp.ne.s32.totalorder %s146, %s148
      %p152 = scmp.eq.s32.totalorder %s16, 0
      %p153 = por %p151, %p152
      %p154 = scmp.ne.s32.totalorder %s146, %s148
      %p155 = scmp.eq.s32.totalorder %s21, 1
      %p156 = por %p154, %p155
      %p157 = scmp.ne.s32.totalorder %s148, %s149
      %p158 = scmp.eq.s32.totalorder %s21, 0
      %p159 = por %p157, %p158
      %p160 = scmp.ne.s32.totalorder %s148, %s149
      %p161 = scmp.eq.s32.totalorder %s22, 1
      %p162 = por %p160, %p161
      %p164 = scmp.ne.s32.totalorder %s149, %s163
      %p165 = scmp.eq.s32.totalorder %s22, 0
      %p166 = por %p164, %p165
      %s168 = sadd.s32 %s167, 1
      %p171 = scmp.eq.s32.totalorder %s16, 1
      %p172 = scmp.ne.s32.totalorder %s167, %s169
      %p173 = scmp.eq.s32.totalorder %s16, 0
      %p174 = por %p172, %p173
      %p175 = scmp.ne.s32.totalorder %s167, %s169
      %p176 = scmp.eq.s32.totalorder %s21, 1
      %p177 = por %p175, %p176
      %p178 = scmp.ne.s32.totalorder %s169, %s170
      %p179 = scmp.eq.s32.totalorder %s21, 0
      %p180 = por %p178, %p179
      %p181 = scmp.ne.s32.totalorder %s169, %s170
      %p182 = scmp.eq.s32.totalorder %s22, 1
      %p183 = por %p181, %p182
      %p185 = scmp.ne.s32.totalorder %s170, %s184
      %p186 = scmp.eq.s32.totalorder %s22, 0
      %p187 = por %p185, %p186
      %s188 = ssub.s32 %s23, %s35
      %s189 = ssub.s32 %s24, %s31
      %s190 = sor.u32 %s188, %s189
      %p191 = scmp.eq.s32.totalorder %s190, 0
      %s193 = sadd.s32 %s192, 1
      %s194 = scalar_select %p191, %s192, %s193
      %p197 = pneg %p191
      %p198 = scmp.eq.s32.totalorder %s16, 1
      %p199 = por %p197, %p198
      %p200 = scmp.ne.s32.totalorder %s192, %s195
      %p201 = scmp.eq.s32.totalorder %s16, 0
      %p202 = por %p200, %p201
      %p203 = scmp.ne.s32.totalorder %s192, %s195
      %p204 = scmp.eq.s32.totalorder %s21, 1
      %p205 = por %p203, %p204
      %p206 = scmp.ne.s32.totalorder %s195, %s196
      %p207 = scmp.eq.s32.totalorder %s21, 0
      %p208 = por %p206, %p207
      %p209 = scmp.ne.s32.totalorder %s195, %s196
      %p210 = scmp.eq.s32.totalorder %s22, 1
      %p211 = por %p209, %p210
      %p213 = scmp.ne.s32.totalorder %s196, %s212
      %p214 = scmp.eq.s32.totalorder %s22, 0
      %p215 = por %p213, %p214
      %p216 = scmp.le.s32.totalorder 1, %s16
      %p217 = scmp.lt.s32.totalorder %s16, 3
      %p218 = pnand %p216, %p217
      %p219 = pneg %p218
      // Predicated region
      $region9: #{tpu_custom_call.1} parent=5 // pred_check
        _
      $region10: #{tpu_custom_call.1} parent=5 // pred_check_branch
        %221 = sbr.rel (%p218) target = $region12
      $region11: #{tpu_custom_call.1} parent=5 // pred_region
        %s222 = ssub.s32 %s16, 1
        // Predicated region
        $region13: #{tpu_custom_call.1} parent=11 // pred_check
          %p223 = pneg %p75
        $region14: #{tpu_custom_call.1} parent=11 // pred_check_branch
          %225 = sbr.rel (%p223) target = $region16
        $region15: #{tpu_custom_call.1} parent=11 // pred_region
          _
        $region16: #{tpu_custom_call.1} parent=11 // pred_fallthru
          _
        // Predicated region
        $region17: #{tpu_custom_call.1} parent=11 // pred_check
          %p226 = pneg %p96
        $region18: #{tpu_custom_call.1} parent=11 // pred_check_branch
          %228 = sbr.rel (%p226) target = $region20
        $region19: #{tpu_custom_call.1} parent=11 // pred_region
          _
        $region20: #{tpu_custom_call.1} parent=11 // pred_fallthru
          _
        // Predicated region
        $region21: #{tpu_custom_call.1} parent=11 // pred_check
          %p229 = pneg %p117
        $region22: #{tpu_custom_call.1} parent=11 // pred_check_branch
          %231 = sbr.rel (%p229) target = $region24
        $region23: #{tpu_custom_call.1} parent=11 // pred_region
          _
        $region24: #{tpu_custom_call.1} parent=11 // pred_fallthru
          _
        // Predicated region
        $region25: #{tpu_custom_call.1} parent=11 // pred_check
          %p232 = pneg %p138
        $region26: #{tpu_custom_call.1} parent=11 // pred_check_branch
          %234 = sbr.rel (%p232) target = $region28
        $region27: #{tpu_custom_call.1} parent=11 // pred_region
          _
        $region28: #{tpu_custom_call.1} parent=11 // pred_fallthru
          _
        // Predicated region
        $region29: #{tpu_custom_call.1} parent=11 // pred_check
          %p235 = pneg %p159
        $region30: #{tpu_custom_call.1} parent=11 // pred_check_branch
          %237 = sbr.rel (%p235) target = $region32
        $region31: #{tpu_custom_call.1} parent=11 // pred_region
          _
        $region32: #{tpu_custom_call.1} parent=11 // pred_fallthru
          _
        // Predicated region
        $region33: #{tpu_custom_call.1} parent=11 // pred_check
          %p238 = pneg %p180
        $region34: #{tpu_custom_call.1} parent=11 // pred_check_branch
          %240 = sbr.rel (%p238) target = $region36
        $region35: #{tpu_custom_call.1} parent=11 // pred_region
          _
        $region36: #{tpu_custom_call.1} parent=11 // pred_fallthru
          _
      $region12: #{tpu_custom_call.1} parent=5 // pred_fallthru
        _
      %p241 = scmp.lt.s32.totalorder %s16, 2
      // Predicated region
      $region37: #{tpu_custom_call.1} parent=5 // pred_check
        %p242 = pneg %p241
      $region38: #{tpu_custom_call.1} parent=5 // pred_check_branch
        %244 = sbr.rel (%p242) target = $region40
      $region39: #{tpu_custom_call.1} parent=5 // pred_region
        // Predicated region
        $region41: #{tpu_custom_call.1} parent=39 // pred_check
          %p245 = pneg %p48
        $region42: #{tpu_custom_call.1} parent=39 // pred_check_branch
          %247 = sbr.rel (%p245) target = $region44
        $region43: #{tpu_custom_call.1} parent=39 // pred_region
          %p248 = scmp.lt.s32.totalorder %s23, 1
          %s249 = scalar_select %p248, %s23, 1
          %s250 = smul.addr %s249, 54
          %s251 = smul.addr %s250, 8
          %s252 = scalar_lea.vmem %s0, %s251
        $region44: #{tpu_custom_call.1} parent=39 // pred_fallthru
          _
      $region40: #{tpu_custom_call.1} parent=5 // pred_fallthru
        _
      %p253 = scmp.le.s32.totalorder 1, %s16
      %p254 = scmp.lt.s32.totalorder %s16, 3
      %p255 = pnand %p253, %p254
      %p256 = pneg %p255
      // Predicated region
      $region45: #{tpu_custom_call.1} parent=5 // pred_check
        _
      $region46: #{tpu_custom_call.1} parent=5 // pred_check_branch
        %258 = sbr.rel (%p255) target = $region48
      $region47: #{tpu_custom_call.1} parent=5 // pred_region
        %s259 = ssub.s32 %s16, 1
        %p260 = scmp.lt.s32.totalorder %s25, 1
        %s261 = scalar_select %p260, %s25, 1
        %s262 = smul.addr %s261, 54
        %s263 = smul.addr %s262, 8
        %s264 = scalar_lea.vmem %s0, %s263
        %p265 = pneg %p54
        %p266 = pneg %p51
        %p267 = pneg %p75
        %p268 = pneg %p72
        %p269 = pneg %p96
        %p270 = pneg %p93
        %p271 = pneg %p117
        %p272 = pneg %p114
        %p273 = pneg %p138
        %p274 = pneg %p135
        %p275 = pneg %p159
        %p276 = pneg %p156
        %p277 = pneg %p180
        %p278 = pneg %p177
        %p279 = pneg %p208
        %p280 = pneg %p205
        %s281 = sand.u32 %s195, 1
        %s282 = scalar_lea.sflag [#allocation3], %s281
        %s283 = sand.u32 %s195, 1
        %s284 = smul.addr %s283, 256
        %s285 = scalar_lea.vmem [#allocation2], %s284
        %p286 = scmp.lt.s32.totalorder %s25, 1
        %s287 = scalar_select %p286, %s25, 1
        %s288 = smul.addr %s287, 54
        %s289 = smul.addr %s288, 8
        %s290 = scalar_lea.vmem %s0, %s289
        %s291 = smul.u32 16, %s26
        %v292 = vld [vmem:[%s290] sm:$0xff]
        %v293 = vld [vmem:[%s290 + $0x8] sm:$0xff]
        %v294 = vld [vmem:[%s290 + $0x10] sm:$0x3]
        %v295 = vld [vmem:[%s290 + $0x18] sm:$0xff]
        %v296 = vld [vmem:[%s290 + $0x20] sm:$0xff]
        %v297 = vld [vmem:[%s290 + $0x28] sm:$0x3]
        %v298 = vld [vmem:[%s290 + $0x30] sm:$0xff]
        %v299 = vld [vmem:[%s290 + $0x38] sm:$0xff]
        %v300 = vld [vmem:[%s290 + $0x40] sm:$0x3]
        %v301 = vld [vmem:[%s290 + $0x48] sm:$0xff]
        %v302 = vld [vmem:[%s290 + $0x50] sm:$0xff]
        %v303 = vld [vmem:[%s290 + $0x58] sm:$0x3]
        %v304 = vld [vmem:[%s290 + $0x60] sm:$0xff]
        %v305 = vld [vmem:[%s290 + $0x68] sm:$0xff]
        %v306 = vld [vmem:[%s290 + $0x70] sm:$0x3]
        %v307 = vld [vmem:[%s290 + $0x78] sm:$0xff]
        %v308 = vld [vmem:[%s290 + $0x80] sm:$0xff]
        %v309 = vld [vmem:[%s290 + $0x88] sm:$0x3]
        %v310 = vld [vmem:[%s290 + $0x90] sm:$0xff]
        %v311 = vld [vmem:[%s290 + $0x98] sm:$0xff]
        %v312 = vld [vmem:[%s290 + $0xa0] sm:$0x3]
        %v313 = vld [vmem:[%s290 + $0xa8] sm:$0xff]
        %v314 = vld [vmem:[%s290 + $0xb0] sm:$0xff]
        %v315 = vld [vmem:[%s290 + $0xb8] sm:$0x3]
        %v316 = vld [vmem:[%s290 + $0xc0] sm:$0xff]
        %v317 = vld [vmem:[%s290 + $0xc8] sm:$0xff]
        %v318 = vld [vmem:[%s290 + $0xd0] sm:$0x3]
        %v319 = vld [vmem:[%s290 + $0xd8] sm:$0xff]
        %v320 = vld [vmem:[%s290 + $0xe0] sm:$0xff]
        %v321 = vld [vmem:[%s290 + $0xe8] sm:$0x3]
        %v322 = vld [vmem:[%s290 + $0xf0] sm:$0xff]
        %v323 = vld [vmem:[%s290 + $0xf8] sm:$0xff]
        %v324 = vld [vmem:[%s290 + $0x100] sm:$0x3]
        %v325 = vld [vmem:[%s290 + $0x108] sm:$0xff]
        %v326 = vld [vmem:[%s290 + $0x110] sm:$0xff]
        %v327 = vld [vmem:[%s290 + $0x118] sm:$0x3]
        %v328 = vld [vmem:[%s290 + $0x120] sm:$0xff]
        %v329 = vld [vmem:[%s290 + $0x128] sm:$0xff]
        %v330 = vld [vmem:[%s290 + $0x130] sm:$0x3]
        %v331 = vld [vmem:[%s290 + $0x138] sm:$0xff]
        %v332 = vld [vmem:[%s290 + $0x140] sm:$0xff]
        %v333 = vld [vmem:[%s290 + $0x148] sm:$0x3]
        %v334 = vld [vmem:[%s290 + $0x150] sm:$0xff]
        %v335 = vld [vmem:[%s290 + $0x158] sm:$0xff]
        %v336 = vld [vmem:[%s290 + $0x160] sm:$0x3]
        %v337 = vld [vmem:[%s290 + $0x168] sm:$0xff]
        %v338 = vld [vmem:[%s290 + $0x170] sm:$0xff]
        %v339 = vld [vmem:[%s290 + $0x178] sm:$0x3]
        %v340 = vld [vmem:[%s290 + $0x180] sm:$0xff]
        %v341 = vld [vmem:[%s290 + $0x188] sm:$0xff]
        %v342 = vld [vmem:[%s290 + $0x190] sm:$0x3]
        %v343 = vld [vmem:[%s290 + $0x198] sm:$0xff]
        %v344 = vld [vmem:[%s290 + $0x1a0] sm:$0xff]
        %v345 = vld [vmem:[%s290 + $0x1a8] sm:$0x3]
        %v346 = vld [vmem:[%s1] sm:$0x7]
        %v347 = vld [vmem:[%s1 + $0x4] sm:$0x7]
        %v348 = vld [vmem:[%s1 + $0x8] sm:$0x7]
        %v349 = vlaneseq
        %v350 = vshrl.u32 %v349, 7
        %v351 = vsub.s32 0, %v350
        %v352 = vrot.slane %v346, %v351
        %v353 = vmul.f32 %v292, %v352
        %v354 = vmul.f32 %v293, %v352
        %v355 = vmul.f32 %v295, %v352
        %v356 = vmul.f32 %v296, %v352
        %v357 = vmul.f32 %v298, %v352
        %v358 = vmul.f32 %v299, %v352
        %v359 = vmul.f32 %v301, %v352
        %v360 = vmul.f32 %v302, %v352
        %v361 = vmul.f32 %v304, %v352
        %v362 = vmul.f32 %v305, %v352
        %v363 = vmul.f32 %v307, %v352
        %v364 = vmul.f32 %v308, %v352
        %v365 = vmul.f32 %v310, %v352
        %v366 = vmul.f32 %v311, %v352
        %v367 = vmul.f32 %v313, %v352
        %v368 = vmul.f32 %v314, %v352
        %v369 = vmul.f32 %v316, %v352
        %v370 = vmul.f32 %v317, %v352
        %v371 = vmul.f32 %v319, %v352
        %v372 = vmul.f32 %v320, %v352
        %v373 = vmul.f32 %v322, %v352
        %v374 = vmul.f32 %v323, %v352
        %v375 = vmul.f32 %v325, %v352
        %v376 = vmul.f32 %v326, %v352
        %v377 = vmul.f32 %v328, %v352
        %v378 = vmul.f32 %v329, %v352
        %v379 = vmul.f32 %v331, %v352
        %v380 = vmul.f32 %v332, %v352
        %v381 = vmul.f32 %v334, %v352
        %v382 = vmul.f32 %v335, %v352
        %v383 = vmul.f32 %v337, %v352
        %v384 = vmul.f32 %v338, %v352
        %v385 = vadd.f32 %v353, 0.0
        %v386 = vadd.f32 %v354, 0.0
        %v387 = vadd.f32 %v355, 0.0
        %v388 = vadd.f32 %v356, 0.0
        %v389 = vadd.f32 %v357, 0.0
        %v390 = vadd.f32 %v358, 0.0
        %v391 = vadd.f32 %v359, 0.0
        %v392 = vadd.f32 %v360, 0.0
        %v393 = vadd.f32 %v361, 0.0
        %v394 = vadd.f32 %v362, 0.0
        %v395 = vadd.f32 %v363, 0.0
        %v396 = vadd.f32 %v364, 0.0
        %v397 = vadd.f32 %v365, 0.0
        %v398 = vadd.f32 %v366, 0.0
        %v399 = vadd.f32 %v367, 0.0
        %v400 = vadd.f32 %v368, 0.0
        %v401 = vadd.f32 %v369, 0.0
        %v402 = vadd.f32 %v370, 0.0
        %v403 = vadd.f32 %v371, 0.0
        %v404 = vadd.f32 %v372, 0.0
        %v405 = vadd.f32 %v373, 0.0
        %v406 = vadd.f32 %v374, 0.0
        %v407 = vadd.f32 %v375, 0.0
        %v408 = vadd.f32 %v376, 0.0
        %v409 = vadd.f32 %v377, 0.0
        %v410 = vadd.f32 %v378, 0.0
        %v411 = vadd.f32 %v379, 0.0
        %v412 = vadd.f32 %v380, 0.0
        %v413 = vadd.f32 %v381, 0.0
        %v414 = vadd.f32 %v382, 0.0
        %v415 = vadd.f32 %v383, 0.0
        %v416 = vadd.f32 %v384, 0.0
        %v417 = vlaneseq
        %v418 = vshrl.u32 %v417, 7
        %v419 = vsub.s32 0, %v418
        %v420 = vrot.slane %v347, %v419
        %v421 = vmul.f32 %v295, %v420
        %v422 = vmul.f32 %v296, %v420
        %v423 = vmul.f32 %v298, %v420
        %v424 = vmul.f32 %v299, %v420
        %v425 = vmul.f32 %v301, %v420
        %v426 = vmul.f32 %v302, %v420
        %v427 = vmul.f32 %v304, %v420
        %v428 = vmul.f32 %v305, %v420
        %v429 = vmul.f32 %v307, %v420
        %v430 = vmul.f32 %v308, %v420
        %v431 = vmul.f32 %v310, %v420
        %v432 = vmul.f32 %v311, %v420
        %v433 = vmul.f32 %v313, %v420
        %v434 = vmul.f32 %v314, %v420
        %v435 = vmul.f32 %v316, %v420
        %v436 = vmul.f32 %v317, %v420
        %v437 = vmul.f32 %v319, %v420
        %v438 = vmul.f32 %v320, %v420
        %v439 = vmul.f32 %v322, %v420
        %v440 = vmul.f32 %v323, %v420
        %v441 = vmul.f32 %v325, %v420
        %v442 = vmul.f32 %v326, %v420
        %v443 = vmul.f32 %v328, %v420
        %v444 = vmul.f32 %v329, %v420
        %v445 = vmul.f32 %v331, %v420
        %v446 = vmul.f32 %v332, %v420
        %v447 = vmul.f32 %v334, %v420
        %v448 = vmul.f32 %v335, %v420
        %v449 = vmul.f32 %v337, %v420
        %v450 = vmul.f32 %v338, %v420
        %v451 = vmul.f32 %v340, %v420
        %v452 = vmul.f32 %v341, %v420
        %v453 = vadd.f32 %v385, %v421
        %v454 = vadd.f32 %v386, %v422
        %v455 = vadd.f32 %v387, %v423
        %v456 = vadd.f32 %v388, %v424
        %v457 = vadd.f32 %v389, %v425
        %v458 = vadd.f32 %v390, %v426
        %v459 = vadd.f32 %v391, %v427
        %v460 = vadd.f32 %v392, %v428
        %v461 = vadd.f32 %v393, %v429
        %v462 = vadd.f32 %v394, %v430
        %v463 = vadd.f32 %v395, %v431
        %v464 = vadd.f32 %v396, %v432
        %v465 = vadd.f32 %v397, %v433
        %v466 = vadd.f32 %v398, %v434
        %v467 = vadd.f32 %v399, %v435
        %v468 = vadd.f32 %v400, %v436
        %v469 = vadd.f32 %v401, %v437
        %v470 = vadd.f32 %v402, %v438
        %v471 = vadd.f32 %v403, %v439
        %v472 = vadd.f32 %v404, %v440
        %v473 = vadd.f32 %v405, %v441
        %v474 = vadd.f32 %v406, %v442
        %v475 = vadd.f32 %v407, %v443
        %v476 = vadd.f32 %v408, %v444
        %v477 = vadd.f32 %v409, %v445
        %v478 = vadd.f32 %v410, %v446
        %v479 = vadd.f32 %v411, %v447
        %v480 = vadd.f32 %v412, %v448
        %v481 = vadd.f32 %v413, %v449
        %v482 = vadd.f32 %v414, %v450
        %v483 = vadd.f32 %v415, %v451
        %v484 = vadd.f32 %v416, %v452
        %v485 = vlaneseq
        %v486 = vshrl.u32 %v485, 7
        %v487 = vsub.s32 0, %v486
        %v488 = vrot.slane %v348, %v487
        %v489 = vmul.f32 %v298, %v488
        %v490 = vmul.f32 %v299, %v488
        %v491 = vmul.f32 %v301, %v488
        %v492 = vmul.f32 %v302, %v488
        %v493 = vmul.f32 %v304, %v488
        %v494 = vmul.f32 %v305, %v488
        %v495 = vmul.f32 %v307, %v488
        %v496 = vmul.f32 %v308, %v488
        %v497 = vmul.f32 %v310, %v488
        %v498 = vmul.f32 %v311, %v488
        %v499 = vmul.f32 %v313, %v488
        %v500 = vmul.f32 %v314, %v488
        %v501 = vmul.f32 %v316, %v488
        %v502 = vmul.f32 %v317, %v488
        %v503 = vmul.f32 %v319, %v488
        %v504 = vmul.f32 %v320, %v488
        %v505 = vmul.f32 %v322, %v488
        %v506 = vmul.f32 %v323, %v488
        %v507 = vmul.f32 %v325, %v488
        %v508 = vmul.f32 %v326, %v488
        %v509 = vmul.f32 %v328, %v488
        %v510 = vmul.f32 %v329, %v488
        %v511 = vmul.f32 %v331, %v488
        %v512 = vmul.f32 %v332, %v488
        %v513 = vmul.f32 %v334, %v488
        %v514 = vmul.f32 %v335, %v488
        %v515 = vmul.f32 %v337, %v488
        %v516 = vmul.f32 %v338, %v488
        %v517 = vmul.f32 %v340, %v488
        %v518 = vmul.f32 %v341, %v488
        %v519 = vmul.f32 %v343, %v488
        %v520 = vmul.f32 %v344, %v488
        %v521 = vadd.f32 %v453, %v489
        %v522 = vadd.f32 %v454, %v490
        %v523 = vadd.f32 %v455, %v491
        %v524 = vadd.f32 %v456, %v492
        %v525 = vadd.f32 %v457, %v493
        %v526 = vadd.f32 %v458, %v494
        %v527 = vadd.f32 %v459, %v495
        %v528 = vadd.f32 %v460, %v496
        %v529 = vadd.f32 %v461, %v497
        %v530 = vadd.f32 %v462, %v498
        %v531 = vadd.f32 %v463, %v499
        %v532 = vadd.f32 %v464, %v500
        %v533 = vadd.f32 %v465, %v501
        %v534 = vadd.f32 %v466, %v502
        %v535 = vadd.f32 %v467, %v503
        %v536 = vadd.f32 %v468, %v504
        %v537 = vadd.f32 %v469, %v505
        %v538 = vadd.f32 %v470, %v506
        %v539 = vadd.f32 %v471, %v507
        %v540 = vadd.f32 %v472, %v508
        %v541 = vadd.f32 %v473, %v509
        %v542 = vadd.f32 %v474, %v510
        %v543 = vadd.f32 %v475, %v511
        %v544 = vadd.f32 %v476, %v512
        %v545 = vadd.f32 %v477, %v513
        %v546 = vadd.f32 %v478, %v514
        %v547 = vadd.f32 %v479, %v515
        %v548 = vadd.f32 %v480, %v516
        %v549 = vadd.f32 %v481, %v517
        %v550 = vadd.f32 %v482, %v518
        %v551 = vadd.f32 %v483, %v519
        %v552 = vadd.f32 %v484, %v520
        %v553 = vlaneseq
        %v554 = vshrl.u32 %v553, 7
        %v555 = vsub.s32 1, %v554
        %v556 = vrot.slane %v346, %v555
        %v557 = vmul.f32 %v292, %v556
        %v558 = vmul.f32 %v293, %v556
        %v559 = vmul.f32 %v294, %v556
        %v560 = vmul.f32 %v295, %v556
        %v561 = vmul.f32 %v296, %v556
        %v562 = vmul.f32 %v297, %v556
        %v563 = vmul.f32 %v298, %v556
        %v564 = vmul.f32 %v299, %v556
        %v565 = vmul.f32 %v300, %v556
        %v566 = vmul.f32 %v301, %v556
        %v567 = vmul.f32 %v302, %v556
        %v568 = vmul.f32 %v303, %v556
        %v569 = vmul.f32 %v304, %v556
        %v570 = vmul.f32 %v305, %v556
        %v571 = vmul.f32 %v306, %v556
        %v572 = vmul.f32 %v307, %v556
        %v573 = vmul.f32 %v308, %v556
        %v574 = vmul.f32 %v309, %v556
        %v575 = vmul.f32 %v310, %v556
        %v576 = vmul.f32 %v311, %v556
        %v577 = vmul.f32 %v312, %v556
        %v578 = vmul.f32 %v313, %v556
        %v579 = vmul.f32 %v314, %v556
        %v580 = vmul.f32 %v315, %v556
        %v581 = vmul.f32 %v316, %v556
        %v582 = vmul.f32 %v317, %v556
        %v583 = vmul.f32 %v318, %v556
        %v584 = vmul.f32 %v319, %v556
        %v585 = vmul.f32 %v320, %v556
        %v586 = vmul.f32 %v321, %v556
        %v587 = vmul.f32 %v322, %v556
        %v588 = vmul.f32 %v323, %v556
        %v589 = vmul.f32 %v324, %v556
        %v590 = vmul.f32 %v325, %v556
        %v591 = vmul.f32 %v326, %v556
        %v592 = vmul.f32 %v327, %v556
        %v593 = vmul.f32 %v328, %v556
        %v594 = vmul.f32 %v329, %v556
        %v595 = vmul.f32 %v330, %v556
        %v596 = vmul.f32 %v331, %v556
        %v597 = vmul.f32 %v332, %v556
        %v598 = vmul.f32 %v333, %v556
        %v599 = vmul.f32 %v334, %v556
        %v600 = vmul.f32 %v335, %v556
        %v601 = vmul.f32 %v336, %v556
        %v602 = vmul.f32 %v337, %v556
        %v603 = vmul.f32 %v338, %v556
        %v604 = vmul.f32 %v339, %v556
        %vm653 = vcmask 1046528
        %v654 = vrot.slane %v557, 1
        %v655 = vrot.slane %v558, 1
        %v656 = vsel %vm653, %v654, %v655
        %v657 = vrot.slane %v559, 1
        %v658 = vsel %vm653, %v655, %v657
        %v659 = vrot.slane %v560, 1
        %v660 = vrot.slane %v561, 1
        %v661 = vsel %vm653, %v659, %v660
        %v662 = vrot.slane %v562, 1
        %v663 = vsel %vm653, %v660, %v662
        %v664 = vrot.slane %v563, 1
        %v665 = vrot.slane %v564, 1
        %v666 = vsel %vm653, %v664, %v665
        %v667 = vrot.slane %v565, 1
        %v668 = vsel %vm653, %v665, %v667
        %v669 = vrot.slane %v566, 1
        %v670 = vrot.slane %v567, 1
        %v671 = vsel %vm653, %v669, %v670
        %v672 = vrot.slane %v568, 1
        %v673 = vsel %vm653, %v670, %v672
        %v674 = vrot.slane %v569, 1
        %v675 = vrot.slane %v570, 1
        %v676 = vsel %vm653, %v674, %v675
        %v677 = vrot.slane %v571, 1
        %v678 = vsel %vm653, %v675, %v677
        %v679 = vrot.slane %v572, 1
        %v680 = vrot.slane %v573, 1
        %v681 = vsel %vm653, %v679, %v680
        %v682 = vrot.slane %v574, 1
        %v683 = vsel %vm653, %v680, %v682
        %v684 = vrot.slane %v575, 1
        %v685 = vrot.slane %v576, 1
        %v686 = vsel %vm653, %v684, %v685
        %v687 = vrot.slane %v577, 1
        %v688 = vsel %vm653, %v685, %v687
        %v689 = vrot.slane %v578, 1
        %v690 = vrot.slane %v579, 1
        %v691 = vsel %vm653, %v689, %v690
        %v692 = vrot.slane %v580, 1
        %v693 = vsel %vm653, %v690, %v692
        %v694 = vrot.slane %v581, 1
        %v695 = vrot.slane %v582, 1
        %v696 = vsel %vm653, %v694, %v695
        %v697 = vrot.slane %v583, 1
        %v698 = vsel %vm653, %v695, %v697
        %v699 = vrot.slane %v584, 1
        %v700 = vrot.slane %v585, 1
        %v701 = vsel %vm653, %v699, %v700
        %v702 = vrot.slane %v586, 1
        %v703 = vsel %vm653, %v700, %v702
        %v704 = vrot.slane %v587, 1
        %v705 = vrot.slane %v588, 1
        %v706 = vsel %vm653, %v704, %v705
        %v707 = vrot.slane %v589, 1
        %v708 = vsel %vm653, %v705, %v707
        %v709 = vrot.slane %v590, 1
        %v710 = vrot.slane %v591, 1
        %v711 = vsel %vm653, %v709, %v710
        %v712 = vrot.slane %v592, 1
        %v713 = vsel %vm653, %v710, %v712
        %v714 = vrot.slane %v593, 1
        %v715 = vrot.slane %v594, 1
        %v716 = vsel %vm653, %v714, %v715
        %v717 = vrot.slane %v595, 1
        %v718 = vsel %vm653, %v715, %v717
        %v719 = vrot.slane %v596, 1
        %v720 = vrot.slane %v597, 1
        %v721 = vsel %vm653, %v719, %v720
        %v722 = vrot.slane %v598, 1
        %v723 = vsel %vm653, %v720, %v722
        %v724 = vrot.slane %v599, 1
        %v725 = vrot.slane %v600, 1
        %v726 = vsel %vm653, %v724, %v725
        %v727 = vrot.slane %v601, 1
        %v728 = vsel %vm653, %v725, %v727
        %v729 = vrot.slane %v602, 1
        %v730 = vrot.slane %v603, 1
        %v731 = vsel %vm653, %v729, %v730
        %v732 = vrot.slane %v604, 1
        %v733 = vsel %vm653, %v730, %v732
        %v766 = vadd.f32 %v521, %v656
        %v767 = vadd.f32 %v522, %v658
        %v768 = vadd.f32 %v523, %v661
        %v769 = vadd.f32 %v524, %v663
        %v770 = vadd.f32 %v525, %v666
        %v771 = vadd.f32 %v526, %v668
        %v772 = vadd.f32 %v527, %v671
        %v773 = vadd.f32 %v528, %v673
        %v774 = vadd.f32 %v529, %v676
        %v775 = vadd.f32 %v530, %v678
        %v776 = vadd.f32 %v531, %v681
        %v777 = vadd.f32 %v532, %v683
        %v778 = vadd.f32 %v533, %v686
        %v779 = vadd.f32 %v534, %v688
        %v780 = vadd.f32 %v535, %v691
        %v781 = vadd.f32 %v536, %v693
        %v782 = vadd.f32 %v537, %v696
        %v783 = vadd.f32 %v538, %v698
        %v784 = vadd.f32 %v539, %v701
        %v785 = vadd.f32 %v540, %v703
        %v786 = vadd.f32 %v541, %v706
        %v787 = vadd.f32 %v542, %v708
        %v788 = vadd.f32 %v543, %v711
        %v789 = vadd.f32 %v544, %v713
        %v790 = vadd.f32 %v545, %v716
        %v791 = vadd.f32 %v546, %v718
        %v792 = vadd.f32 %v547, %v721
        %v793 = vadd.f32 %v548, %v723
        %v794 = vadd.f32 %v549, %v726
        %v795 = vadd.f32 %v550, %v728
        %v796 = vadd.f32 %v551, %v731
        %v797 = vadd.f32 %v552, %v733
        %v798 = vlaneseq
        %v799 = vshrl.u32 %v798, 7
        %v800 = vsub.s32 1, %v799
        %v801 = vrot.slane %v347, %v800
        %v802 = vmul.f32 %v295, %v801
        %v803 = vmul.f32 %v296, %v801
        %v804 = vmul.f32 %v297, %v801
        %v805 = vmul.f32 %v298, %v801
        %v806 = vmul.f32 %v299, %v801
        %v807 = vmul.f32 %v300, %v801
        %v808 = vmul.f32 %v301, %v801
        %v809 = vmul.f32 %v302, %v801
        %v810 = vmul.f32 %v303, %v801
        %v811 = vmul.f32 %v304, %v801
        %v812 = vmul.f32 %v305, %v801
        %v813 = vmul.f32 %v306, %v801
        %v814 = vmul.f32 %v307, %v801
        %v815 = vmul.f32 %v308, %v801
        %v816 = vmul.f32 %v309, %v801
        %v817 = vmul.f32 %v310, %v801
        %v818 = vmul.f32 %v311, %v801
        %v819 = vmul.f32 %v312, %v801
        %v820 = vmul.f32 %v313, %v801
        %v821 = vmul.f32 %v314, %v801
        %v822 = vmul.f32 %v315, %v801
        %v823 = vmul.f32 %v316, %v801
        %v824 = vmul.f32 %v317, %v801
        %v825 = vmul.f32 %v318, %v801
        %v826 = vmul.f32 %v319, %v801
        %v827 = vmul.f32 %v320, %v801
        %v828 = vmul.f32 %v321, %v801
        %v829 = vmul.f32 %v322, %v801
        %v830 = vmul.f32 %v323, %v801
        %v831 = vmul.f32 %v324, %v801
        %v832 = vmul.f32 %v325, %v801
        %v833 = vmul.f32 %v326, %v801
        %v834 = vmul.f32 %v327, %v801
        %v835 = vmul.f32 %v328, %v801
        %v836 = vmul.f32 %v329, %v801
        %v837 = vmul.f32 %v330, %v801
        %v838 = vmul.f32 %v331, %v801
        %v839 = vmul.f32 %v332, %v801
        %v840 = vmul.f32 %v333, %v801
        %v841 = vmul.f32 %v334, %v801
        %v842 = vmul.f32 %v335, %v801
        %v843 = vmul.f32 %v336, %v801
        %v844 = vmul.f32 %v337, %v801
        %v845 = vmul.f32 %v338, %v801
        %v846 = vmul.f32 %v339, %v801
        %v847 = vmul.f32 %v340, %v801
        %v848 = vmul.f32 %v341, %v801
        %v849 = vmul.f32 %v342, %v801
        %v898 = vrot.slane %v802, 1
        %v899 = vrot.slane %v803, 1
        %v900 = vsel %vm653, %v898, %v899
        %v901 = vrot.slane %v804, 1
        %v902 = vsel %vm653, %v899, %v901
        %v903 = vrot.slane %v805, 1
        %v904 = vrot.slane %v806, 1
        %v905 = vsel %vm653, %v903, %v904
        %v906 = vrot.slane %v807, 1
        %v907 = vsel %vm653, %v904, %v906
        %v908 = vrot.slane %v808, 1
        %v909 = vrot.slane %v809, 1
        %v910 = vsel %vm653, %v908, %v909
        %v911 = vrot.slane %v810, 1
        %v912 = vsel %vm653, %v909, %v911
        %v913 = vrot.slane %v811, 1
        %v914 = vrot.slane %v812, 1
        %v915 = vsel %vm653, %v913, %v914
        %v916 = vrot.slane %v813, 1
        %v917 = vsel %vm653, %v914, %v916
        %v918 = vrot.slane %v814, 1
        %v919 = vrot.slane %v815, 1
        %v920 = vsel %vm653, %v918, %v919
        %v921 = vrot.slane %v816, 1
        %v922 = vsel %vm653, %v919, %v921
        %v923 = vrot.slane %v817, 1
        %v924 = vrot.slane %v818, 1
        %v925 = vsel %vm653, %v923, %v924
        %v926 = vrot.slane %v819, 1
        %v927 = vsel %vm653, %v924, %v926
        %v928 = vrot.slane %v820, 1
        %v929 = vrot.slane %v821, 1
        %v930 = vsel %vm653, %v928, %v929
        %v931 = vrot.slane %v822, 1
        %v932 = vsel %vm653, %v929, %v931
        %v933 = vrot.slane %v823, 1
        %v934 = vrot.slane %v824, 1
        %v935 = vsel %vm653, %v933, %v934
        %v936 = vrot.slane %v825, 1
        %v937 = vsel %vm653, %v934, %v936
        %v938 = vrot.slane %v826, 1
        %v939 = vrot.slane %v827, 1
        %v940 = vsel %vm653, %v938, %v939
        %v941 = vrot.slane %v828, 1
        %v942 = vsel %vm653, %v939, %v941
        %v943 = vrot.slane %v829, 1
        %v944 = vrot.slane %v830, 1
        %v945 = vsel %vm653, %v943, %v944
        %v946 = vrot.slane %v831, 1
        %v947 = vsel %vm653, %v944, %v946
        %v948 = vrot.slane %v832, 1
        %v949 = vrot.slane %v833, 1
        %v950 = vsel %vm653, %v948, %v949
        %v951 = vrot.slane %v834, 1
        %v952 = vsel %vm653, %v949, %v951
        %v953 = vrot.slane %v835, 1
        %v954 = vrot.slane %v836, 1
        %v955 = vsel %vm653, %v953, %v954
        %v956 = vrot.slane %v837, 1
        %v957 = vsel %vm653, %v954, %v956
        %v958 = vrot.slane %v838, 1
        %v959 = vrot.slane %v839, 1
        %v960 = vsel %vm653, %v958, %v959
        %v961 = vrot.slane %v840, 1
        %v962 = vsel %vm653, %v959, %v961
        %v963 = vrot.slane %v841, 1
        %v964 = vrot.slane %v842, 1
        %v965 = vsel %vm653, %v963, %v964
        %v966 = vrot.slane %v843, 1
        %v967 = vsel %vm653, %v964, %v966
        %v968 = vrot.slane %v844, 1
        %v969 = vrot.slane %v845, 1
        %v970 = vsel %vm653, %v968, %v969
        %v971 = vrot.slane %v846, 1
        %v972 = vsel %vm653, %v969, %v971
        %v973 = vrot.slane %v847, 1
        %v974 = vrot.slane %v848, 1
        %v975 = vsel %vm653, %v973, %v974
        %v976 = vrot.slane %v849, 1
        %v977 = vsel %vm653, %v974, %v976
        %v1010 = vadd.f32 %v766, %v900
        %v1011 = vadd.f32 %v767, %v902
        %v1012 = vadd.f32 %v768, %v905
        %v1013 = vadd.f32 %v769, %v907
        %v1014 = vadd.f32 %v770, %v910
        %v1015 = vadd.f32 %v771, %v912
        %v1016 = vadd.f32 %v772, %v915
        %v1017 = vadd.f32 %v773, %v917
        %v1018 = vadd.f32 %v774, %v920
        %v1019 = vadd.f32 %v775, %v922
        %v1020 = vadd.f32 %v776, %v925
        %v1021 = vadd.f32 %v777, %v927
        %v1022 = vadd.f32 %v778, %v930
        %v1023 = vadd.f32 %v779, %v932
        %v1024 = vadd.f32 %v780, %v935
        %v1025 = vadd.f32 %v781, %v937
        %v1026 = vadd.f32 %v782, %v940
        %v1027 = vadd.f32 %v783, %v942
        %v1028 = vadd.f32 %v784, %v945
        %v1029 = vadd.f32 %v785, %v947
        %v1030 = vadd.f32 %v786, %v950
        %v1031 = vadd.f32 %v787, %v952
        %v1032 = vadd.f32 %v788, %v955
        %v1033 = vadd.f32 %v789, %v957
        %v1034 = vadd.f32 %v790, %v960
        %v1035 = vadd.f32 %v791, %v962
        %v1036 = vadd.f32 %v792, %v965
        %v1037 = vadd.f32 %v793, %v967
        %v1038 = vadd.f32 %v794, %v970
        %v1039 = vadd.f32 %v795, %v972
        %v1040 = vadd.f32 %v796, %v975
        %v1041 = vadd.f32 %v797, %v977
        %v1042 = vlaneseq
        %v1043 = vshrl.u32 %v1042, 7
        %v1044 = vsub.s32 1, %v1043
        %v1045 = vrot.slane %v348, %v1044
        %v1046 = vmul.f32 %v298, %v1045
        %v1047 = vmul.f32 %v299, %v1045
        %v1048 = vmul.f32 %v300, %v1045
        %v1049 = vmul.f32 %v301, %v1045
        %v1050 = vmul.f32 %v302, %v1045
        %v1051 = vmul.f32 %v303, %v1045
        %v1052 = vmul.f32 %v304, %v1045
        %v1053 = vmul.f32 %v305, %v1045
        %v1054 = vmul.f32 %v306, %v1045
        %v1055 = vmul.f32 %v307, %v1045
        %v1056 = vmul.f32 %v308, %v1045
        %v1057 = vmul.f32 %v309, %v1045
        %v1058 = vmul.f32 %v310, %v1045
        %v1059 = vmul.f32 %v311, %v1045
        %v1060 = vmul.f32 %v312, %v1045
        %v1061 = vmul.f32 %v313, %v1045
        %v1062 = vmul.f32 %v314, %v1045
        %v1063 = vmul.f32 %v315, %v1045
        %v1064 = vmul.f32 %v316, %v1045
        %v1065 = vmul.f32 %v317, %v1045
        %v1066 = vmul.f32 %v318, %v1045
        %v1067 = vmul.f32 %v319, %v1045
        %v1068 = vmul.f32 %v320, %v1045
        %v1069 = vmul.f32 %v321, %v1045
        %v1070 = vmul.f32 %v322, %v1045
        %v1071 = vmul.f32 %v323, %v1045
        %v1072 = vmul.f32 %v324, %v1045
        %v1073 = vmul.f32 %v325, %v1045
        %v1074 = vmul.f32 %v326, %v1045
        %v1075 = vmul.f32 %v327, %v1045
        %v1076 = vmul.f32 %v328, %v1045
        %v1077 = vmul.f32 %v329, %v1045
        %v1078 = vmul.f32 %v330, %v1045
        %v1079 = vmul.f32 %v331, %v1045
        %v1080 = vmul.f32 %v332, %v1045
        %v1081 = vmul.f32 %v333, %v1045
        %v1082 = vmul.f32 %v334, %v1045
        %v1083 = vmul.f32 %v335, %v1045
        %v1084 = vmul.f32 %v336, %v1045
        %v1085 = vmul.f32 %v337, %v1045
        %v1086 = vmul.f32 %v338, %v1045
        %v1087 = vmul.f32 %v339, %v1045
        %v1088 = vmul.f32 %v340, %v1045
        %v1089 = vmul.f32 %v341, %v1045
        %v1090 = vmul.f32 %v342, %v1045
        %v1091 = vmul.f32 %v343, %v1045
        %v1092 = vmul.f32 %v344, %v1045
        %v1093 = vmul.f32 %v345, %v1045
        %v1142 = vrot.slane %v1046, 1
        %v1143 = vrot.slane %v1047, 1
        %v1144 = vsel %vm653, %v1142, %v1143
        %v1145 = vrot.slane %v1048, 1
        %v1146 = vsel %vm653, %v1143, %v1145
        %v1147 = vrot.slane %v1049, 1
        %v1148 = vrot.slane %v1050, 1
        %v1149 = vsel %vm653, %v1147, %v1148
        %v1150 = vrot.slane %v1051, 1
        %v1151 = vsel %vm653, %v1148, %v1150
        %v1152 = vrot.slane %v1052, 1
        %v1153 = vrot.slane %v1053, 1
        %v1154 = vsel %vm653, %v1152, %v1153
        %v1155 = vrot.slane %v1054, 1
        %v1156 = vsel %vm653, %v1153, %v1155
        %v1157 = vrot.slane %v1055, 1
        %v1158 = vrot.slane %v1056, 1
        %v1159 = vsel %vm653, %v1157, %v1158
        %v1160 = vrot.slane %v1057, 1
        %v1161 = vsel %vm653, %v1158, %v1160
        %v1162 = vrot.slane %v1058, 1
        %v1163 = vrot.slane %v1059, 1
        %v1164 = vsel %vm653, %v1162, %v1163
        %v1165 = vrot.slane %v1060, 1
        %v1166 = vsel %vm653, %v1163, %v1165
        %v1167 = vrot.slane %v1061, 1
        %v1168 = vrot.slane %v1062, 1
        %v1169 = vsel %vm653, %v1167, %v1168
        %v1170 = vrot.slane %v1063, 1
        %v1171 = vsel %vm653, %v1168, %v1170
        %v1172 = vrot.slane %v1064, 1
        %v1173 = vrot.slane %v1065, 1
        %v1174 = vsel %vm653, %v1172, %v1173
        %v1175 = vrot.slane %v1066, 1
        %v1176 = vsel %vm653, %v1173, %v1175
        %v1177 = vrot.slane %v1067, 1
        %v1178 = vrot.slane %v1068, 1
        %v1179 = vsel %vm653, %v1177, %v1178
        %v1180 = vrot.slane %v1069, 1
        %v1181 = vsel %vm653, %v1178, %v1180
        %v1182 = vrot.slane %v1070, 1
        %v1183 = vrot.slane %v1071, 1
        %v1184 = vsel %vm653, %v1182, %v1183
        %v1185 = vrot.slane %v1072, 1
        %v1186 = vsel %vm653, %v1183, %v1185
        %v1187 = vrot.slane %v1073, 1
        %v1188 = vrot.slane %v1074, 1
        %v1189 = vsel %vm653, %v1187, %v1188
        %v1190 = vrot.slane %v1075, 1
        %v1191 = vsel %vm653, %v1188, %v1190
        %v1192 = vrot.slane %v1076, 1
        %v1193 = vrot.slane %v1077, 1
        %v1194 = vsel %vm653, %v1192, %v1193
        %v1195 = vrot.slane %v1078, 1
        %v1196 = vsel %vm653, %v1193, %v1195
        %v1197 = vrot.slane %v1079, 1
        %v1198 = vrot.slane %v1080, 1
        %v1199 = vsel %vm653, %v1197, %v1198
        %v1200 = vrot.slane %v1081, 1
        %v1201 = vsel %vm653, %v1198, %v1200
        %v1202 = vrot.slane %v1082, 1
        %v1203 = vrot.slane %v1083, 1
        %v1204 = vsel %vm653, %v1202, %v1203
        %v1205 = vrot.slane %v1084, 1
        %v1206 = vsel %vm653, %v1203, %v1205
        %v1207 = vrot.slane %v1085, 1
        %v1208 = vrot.slane %v1086, 1
        %v1209 = vsel %vm653, %v1207, %v1208
        %v1210 = vrot.slane %v1087, 1
        %v1211 = vsel %vm653, %v1208, %v1210
        %v1212 = vrot.slane %v1088, 1
        %v1213 = vrot.slane %v1089, 1
        %v1214 = vsel %vm653, %v1212, %v1213
        %v1215 = vrot.slane %v1090, 1
        %v1216 = vsel %vm653, %v1213, %v1215
        %v1217 = vrot.slane %v1091, 1
        %v1218 = vrot.slane %v1092, 1
        %v1219 = vsel %vm653, %v1217, %v1218
        %v1220 = vrot.slane %v1093, 1
        %v1221 = vsel %vm653, %v1218, %v1220
        %v1254 = vadd.f32 %v1010, %v1144
        %v1255 = vadd.f32 %v1011, %v1146
        %v1256 = vadd.f32 %v1012, %v1149
        %v1257 = vadd.f32 %v1013, %v1151
        %v1258 = vadd.f32 %v1014, %v1154
        %v1259 = vadd.f32 %v1015, %v1156
        %v1260 = vadd.f32 %v1016, %v1159
        %v1261 = vadd.f32 %v1017, %v1161
        %v1262 = vadd.f32 %v1018, %v1164
        %v1263 = vadd.f32 %v1019, %v1166
        %v1264 = vadd.f32 %v1020, %v1169
        %v1265 = vadd.f32 %v1021, %v1171
        %v1266 = vadd.f32 %v1022, %v1174
        %v1267 = vadd.f32 %v1023, %v1176
        %v1268 = vadd.f32 %v1024, %v1179
        %v1269 = vadd.f32 %v1025, %v1181
        %v1270 = vadd.f32 %v1026, %v1184
        %v1271 = vadd.f32 %v1027, %v1186
        %v1272 = vadd.f32 %v1028, %v1189
        %v1273 = vadd.f32 %v1029, %v1191
        %v1274 = vadd.f32 %v1030, %v1194
        %v1275 = vadd.f32 %v1031, %v1196
        %v1276 = vadd.f32 %v1032, %v1199
        %v1277 = vadd.f32 %v1033, %v1201
        %v1278 = vadd.f32 %v1034, %v1204
        %v1279 = vadd.f32 %v1035, %v1206
        %v1280 = vadd.f32 %v1036, %v1209
        %v1281 = vadd.f32 %v1037, %v1211
        %v1282 = vadd.f32 %v1038, %v1214
        %v1283 = vadd.f32 %v1039, %v1216
        %v1284 = vadd.f32 %v1040, %v1219
        %v1285 = vadd.f32 %v1041, %v1221
        %v1286 = vlaneseq
        %v1287 = vshrl.u32 %v1286, 7
        %v1288 = vsub.s32 2, %v1287
        %v1289 = vrot.slane %v346, %v1288
        %v1290 = vmul.f32 %v292, %v1289
        %v1291 = vmul.f32 %v293, %v1289
        %v1292 = vmul.f32 %v294, %v1289
        %v1293 = vmul.f32 %v295, %v1289
        %v1294 = vmul.f32 %v296, %v1289
        %v1295 = vmul.f32 %v297, %v1289
        %v1296 = vmul.f32 %v298, %v1289
        %v1297 = vmul.f32 %v299, %v1289
        %v1298 = vmul.f32 %v300, %v1289
        %v1299 = vmul.f32 %v301, %v1289
        %v1300 = vmul.f32 %v302, %v1289
        %v1301 = vmul.f32 %v303, %v1289
        %v1302 = vmul.f32 %v304, %v1289
        %v1303 = vmul.f32 %v305, %v1289
        %v1304 = vmul.f32 %v306, %v1289
        %v1305 = vmul.f32 %v307, %v1289
        %v1306 = vmul.f32 %v308, %v1289
        %v1307 = vmul.f32 %v309, %v1289
        %v1308 = vmul.f32 %v310, %v1289
        %v1309 = vmul.f32 %v311, %v1289
        %v1310 = vmul.f32 %v312, %v1289
        %v1311 = vmul.f32 %v313, %v1289
        %v1312 = vmul.f32 %v314, %v1289
        %v1313 = vmul.f32 %v315, %v1289
        %v1314 = vmul.f32 %v316, %v1289
        %v1315 = vmul.f32 %v317, %v1289
        %v1316 = vmul.f32 %v318, %v1289
        %v1317 = vmul.f32 %v319, %v1289
        %v1318 = vmul.f32 %v320, %v1289
        %v1319 = vmul.f32 %v321, %v1289
        %v1320 = vmul.f32 %v322, %v1289
        %v1321 = vmul.f32 %v323, %v1289
        %v1322 = vmul.f32 %v324, %v1289
        %v1323 = vmul.f32 %v325, %v1289
        %v1324 = vmul.f32 %v326, %v1289
        %v1325 = vmul.f32 %v327, %v1289
        %v1326 = vmul.f32 %v328, %v1289
        %v1327 = vmul.f32 %v329, %v1289
        %v1328 = vmul.f32 %v330, %v1289
        %v1329 = vmul.f32 %v331, %v1289
        %v1330 = vmul.f32 %v332, %v1289
        %v1331 = vmul.f32 %v333, %v1289
        %v1332 = vmul.f32 %v334, %v1289
        %v1333 = vmul.f32 %v335, %v1289
        %v1334 = vmul.f32 %v336, %v1289
        %v1335 = vmul.f32 %v337, %v1289
        %v1336 = vmul.f32 %v338, %v1289
        %v1337 = vmul.f32 %v339, %v1289
        %vm1386 = vcmask 1045504
        %v1387 = vrot.slane %v1290, 2
        %v1388 = vrot.slane %v1291, 2
        %v1389 = vsel %vm1386, %v1387, %v1388
        %v1390 = vrot.slane %v1292, 2
        %v1391 = vsel %vm1386, %v1388, %v1390
        %v1392 = vrot.slane %v1293, 2
        %v1393 = vrot.slane %v1294, 2
        %v1394 = vsel %vm1386, %v1392, %v1393
        %v1395 = vrot.slane %v1295, 2
        %v1396 = vsel %vm1386, %v1393, %v1395
        %v1397 = vrot.slane %v1296, 2
        %v1398 = vrot.slane %v1297, 2
        %v1399 = vsel %vm1386, %v1397, %v1398
        %v1400 = vrot.slane %v1298, 2
        %v1401 = vsel %vm1386, %v1398, %v1400
        %v1402 = vrot.slane %v1299, 2
        %v1403 = vrot.slane %v1300, 2
        %v1404 = vsel %vm1386, %v1402, %v1403
        %v1405 = vrot.slane %v1301, 2
        %v1406 = vsel %vm1386, %v1403, %v1405
        %v1407 = vrot.slane %v1302, 2
        %v1408 = vrot.slane %v1303, 2
        %v1409 = vsel %vm1386, %v1407, %v1408
        %v1410 = vrot.slane %v1304, 2
        %v1411 = vsel %vm1386, %v1408, %v1410
        %v1412 = vrot.slane %v1305, 2
        %v1413 = vrot.slane %v1306, 2
        %v1414 = vsel %vm1386, %v1412, %v1413
        %v1415 = vrot.slane %v1307, 2
        %v1416 = vsel %vm1386, %v1413, %v1415
        %v1417 = vrot.slane %v1308, 2
        %v1418 = vrot.slane %v1309, 2
        %v1419 = vsel %vm1386, %v1417, %v1418
        %v1420 = vrot.slane %v1310, 2
        %v1421 = vsel %vm1386, %v1418, %v1420
        %v1422 = vrot.slane %v1311, 2
        %v1423 = vrot.slane %v1312, 2
        %v1424 = vsel %vm1386, %v1422, %v1423
        %v1425 = vrot.slane %v1313, 2
        %v1426 = vsel %vm1386, %v1423, %v1425
        %v1427 = vrot.slane %v1314, 2
        %v1428 = vrot.slane %v1315, 2
        %v1429 = vsel %vm1386, %v1427, %v1428
        %v1430 = vrot.slane %v1316, 2
        %v1431 = vsel %vm1386, %v1428, %v1430
        %v1432 = vrot.slane %v1317, 2
        %v1433 = vrot.slane %v1318, 2
        %v1434 = vsel %vm1386, %v1432, %v1433
        %v1435 = vrot.slane %v1319, 2
        %v1436 = vsel %vm1386, %v1433, %v1435
        %v1437 = vrot.slane %v1320, 2
        %v1438 = vrot.slane %v1321, 2
        %v1439 = vsel %vm1386, %v1437, %v1438
        %v1440 = vrot.slane %v1322, 2
        %v1441 = vsel %vm1386, %v1438, %v1440
        %v1442 = vrot.slane %v1323, 2
        %v1443 = vrot.slane %v1324, 2
        %v1444 = vsel %vm1386, %v1442, %v1443
        %v1445 = vrot.slane %v1325, 2
        %v1446 = vsel %vm1386, %v1443, %v1445
        %v1447 = vrot.slane %v1326, 2
        %v1448 = vrot.slane %v1327, 2
        %v1449 = vsel %vm1386, %v1447, %v1448
        %v1450 = vrot.slane %v1328, 2
        %v1451 = vsel %vm1386, %v1448, %v1450
        %v1452 = vrot.slane %v1329, 2
        %v1453 = vrot.slane %v1330, 2
        %v1454 = vsel %vm1386, %v1452, %v1453
        %v1455 = vrot.slane %v1331, 2
        %v1456 = vsel %vm1386, %v1453, %v1455
        %v1457 = vrot.slane %v1332, 2
        %v1458 = vrot.slane %v1333, 2
        %v1459 = vsel %vm1386, %v1457, %v1458
        %v1460 = vrot.slane %v1334, 2
        %v1461 = vsel %vm1386, %v1458, %v1460
        %v1462 = vrot.slane %v1335, 2
        %v1463 = vrot.slane %v1336, 2
        %v1464 = vsel %vm1386, %v1462, %v1463
        %v1465 = vrot.slane %v1337, 2
        %v1466 = vsel %vm1386, %v1463, %v1465
        %v1499 = vadd.f32 %v1254, %v1389
        %v1500 = vadd.f32 %v1255, %v1391
        %v1501 = vadd.f32 %v1256, %v1394
        %v1502 = vadd.f32 %v1257, %v1396
        %v1503 = vadd.f32 %v1258, %v1399
        %v1504 = vadd.f32 %v1259, %v1401
        %v1505 = vadd.f32 %v1260, %v1404
        %v1506 = vadd.f32 %v1261, %v1406
        %v1507 = vadd.f32 %v1262, %v1409
        %v1508 = vadd.f32 %v1263, %v1411
        %v1509 = vadd.f32 %v1264, %v1414
        %v1510 = vadd.f32 %v1265, %v1416
        %v1511 = vadd.f32 %v1266, %v1419
        %v1512 = vadd.f32 %v1267, %v1421
        %v1513 = vadd.f32 %v1268, %v1424
        %v1514 = vadd.f32 %v1269, %v1426
        %v1515 = vadd.f32 %v1270, %v1429
        %v1516 = vadd.f32 %v1271, %v1431
        %v1517 = vadd.f32 %v1272, %v1434
        %v1518 = vadd.f32 %v1273, %v1436
        %v1519 = vadd.f32 %v1274, %v1439
        %v1520 = vadd.f32 %v1275, %v1441
        %v1521 = vadd.f32 %v1276, %v1444
        %v1522 = vadd.f32 %v1277, %v1446
        %v1523 = vadd.f32 %v1278, %v1449
        %v1524 = vadd.f32 %v1279, %v1451
        %v1525 = vadd.f32 %v1280, %v1454
        %v1526 = vadd.f32 %v1281, %v1456
        %v1527 = vadd.f32 %v1282, %v1459
        %v1528 = vadd.f32 %v1283, %v1461
        %v1529 = vadd.f32 %v1284, %v1464
        %v1530 = vadd.f32 %v1285, %v1466
        %v1531 = vlaneseq
        %v1532 = vshrl.u32 %v1531, 7
        %v1533 = vsub.s32 2, %v1532
        %v1534 = vrot.slane %v347, %v1533
        %v1535 = vmul.f32 %v295, %v1534
        %v1536 = vmul.f32 %v296, %v1534
        %v1537 = vmul.f32 %v297, %v1534
        %v1538 = vmul.f32 %v298, %v1534
        %v1539 = vmul.f32 %v299, %v1534
        %v1540 = vmul.f32 %v300, %v1534
        %v1541 = vmul.f32 %v301, %v1534
        %v1542 = vmul.f32 %v302, %v1534
        %v1543 = vmul.f32 %v303, %v1534
        %v1544 = vmul.f32 %v304, %v1534
        %v1545 = vmul.f32 %v305, %v1534
        %v1546 = vmul.f32 %v306, %v1534
        %v1547 = vmul.f32 %v307, %v1534
        %v1548 = vmul.f32 %v308, %v1534
        %v1549 = vmul.f32 %v309, %v1534
        %v1550 = vmul.f32 %v310, %v1534
        %v1551 = vmul.f32 %v311, %v1534
        %v1552 = vmul.f32 %v312, %v1534
        %v1553 = vmul.f32 %v313, %v1534
        %v1554 = vmul.f32 %v314, %v1534
        %v1555 = vmul.f32 %v315, %v1534
        %v1556 = vmul.f32 %v316, %v1534
        %v1557 = vmul.f32 %v317, %v1534
        %v1558 = vmul.f32 %v318, %v1534
        %v1559 = vmul.f32 %v319, %v1534
        %v1560 = vmul.f32 %v320, %v1534
        %v1561 = vmul.f32 %v321, %v1534
        %v1562 = vmul.f32 %v322, %v1534
        %v1563 = vmul.f32 %v323, %v1534
        %v1564 = vmul.f32 %v324, %v1534
        %v1565 = vmul.f32 %v325, %v1534
        %v1566 = vmul.f32 %v326, %v1534
        %v1567 = vmul.f32 %v327, %v1534
        %v1568 = vmul.f32 %v328, %v1534
        %v1569 = vmul.f32 %v329, %v1534
        %v1570 = vmul.f32 %v330, %v1534
        %v1571 = vmul.f32 %v331, %v1534
        %v1572 = vmul.f32 %v332, %v1534
        %v1573 = vmul.f32 %v333, %v1534
        %v1574 = vmul.f32 %v334, %v1534
        %v1575 = vmul.f32 %v335, %v1534
        %v1576 = vmul.f32 %v336, %v1534
        %v1577 = vmul.f32 %v337, %v1534
        %v1578 = vmul.f32 %v338, %v1534
        %v1579 = vmul.f32 %v339, %v1534
        %v1580 = vmul.f32 %v340, %v1534
        %v1581 = vmul.f32 %v341, %v1534
        %v1582 = vmul.f32 %v342, %v1534
        %v1631 = vrot.slane %v1535, 2
        %v1632 = vrot.slane %v1536, 2
        %v1633 = vsel %vm1386, %v1631, %v1632
        %v1634 = vrot.slane %v1537, 2
        %v1635 = vsel %vm1386, %v1632, %v1634
        %v1636 = vrot.slane %v1538, 2
        %v1637 = vrot.slane %v1539, 2
        %v1638 = vsel %vm1386, %v1636, %v1637
        %v1639 = vrot.slane %v1540, 2
        %v1640 = vsel %vm1386, %v1637, %v1639
        %v1641 = vrot.slane %v1541, 2
        %v1642 = vrot.slane %v1542, 2
        %v1643 = vsel %vm1386, %v1641, %v1642
        %v1644 = vrot.slane %v1543, 2
        %v1645 = vsel %vm1386, %v1642, %v1644
        %v1646 = vrot.slane %v1544, 2
        %v1647 = vrot.slane %v1545, 2
        %v1648 = vsel %vm1386, %v1646, %v1647
        %v1649 = vrot.slane %v1546, 2
        %v1650 = vsel %vm1386, %v1647, %v1649
        %v1651 = vrot.slane %v1547, 2
        %v1652 = vrot.slane %v1548, 2
        %v1653 = vsel %vm1386, %v1651, %v1652
        %v1654 = vrot.slane %v1549, 2
        %v1655 = vsel %vm1386, %v1652, %v1654
        %v1656 = vrot.slane %v1550, 2
        %v1657 = vrot.slane %v1551, 2
        %v1658 = vsel %vm1386, %v1656, %v1657
        %v1659 = vrot.slane %v1552, 2
        %v1660 = vsel %vm1386, %v1657, %v1659
        %v1661 = vrot.slane %v1553, 2
        %v1662 = vrot.slane %v1554, 2
        %v1663 = vsel %vm1386, %v1661, %v1662
        %v1664 = vrot.slane %v1555, 2
        %v1665 = vsel %vm1386, %v1662, %v1664
        %v1666 = vrot.slane %v1556, 2
        %v1667 = vrot.slane %v1557, 2
        %v1668 = vsel %vm1386, %v1666, %v1667
        %v1669 = vrot.slane %v1558, 2
        %v1670 = vsel %vm1386, %v1667, %v1669
        %v1671 = vrot.slane %v1559, 2
        %v1672 = vrot.slane %v1560, 2
        %v1673 = vsel %vm1386, %v1671, %v1672
        %v1674 = vrot.slane %v1561, 2
        %v1675 = vsel %vm1386, %v1672, %v1674
        %v1676 = vrot.slane %v1562, 2
        %v1677 = vrot.slane %v1563, 2
        %v1678 = vsel %vm1386, %v1676, %v1677
        %v1679 = vrot.slane %v1564, 2
        %v1680 = vsel %vm1386, %v1677, %v1679
        %v1681 = vrot.slane %v1565, 2
        %v1682 = vrot.slane %v1566, 2
        %v1683 = vsel %vm1386, %v1681, %v1682
        %v1684 = vrot.slane %v1567, 2
        %v1685 = vsel %vm1386, %v1682, %v1684
        %v1686 = vrot.slane %v1568, 2
        %v1687 = vrot.slane %v1569, 2
        %v1688 = vsel %vm1386, %v1686, %v1687
        %v1689 = vrot.slane %v1570, 2
        %v1690 = vsel %vm1386, %v1687, %v1689
        %v1691 = vrot.slane %v1571, 2
        %v1692 = vrot.slane %v1572, 2
        %v1693 = vsel %vm1386, %v1691, %v1692
        %v1694 = vrot.slane %v1573, 2
        %v1695 = vsel %vm1386, %v1692, %v1694
        %v1696 = vrot.slane %v1574, 2
        %v1697 = vrot.slane %v1575, 2
        %v1698 = vsel %vm1386, %v1696, %v1697
        %v1699 = vrot.slane %v1576, 2
        %v1700 = vsel %vm1386, %v1697, %v1699
        %v1701 = vrot.slane %v1577, 2
        %v1702 = vrot.slane %v1578, 2
        %v1703 = vsel %vm1386, %v1701, %v1702
        %v1704 = vrot.slane %v1579, 2
        %v1705 = vsel %vm1386, %v1702, %v1704
        %v1706 = vrot.slane %v1580, 2
        %v1707 = vrot.slane %v1581, 2
        %v1708 = vsel %vm1386, %v1706, %v1707
        %v1709 = vrot.slane %v1582, 2
        %v1710 = vsel %vm1386, %v1707, %v1709
        %v1743 = vadd.f32 %v1499, %v1633
        %v1744 = vadd.f32 %v1500, %v1635
        %v1745 = vadd.f32 %v1501, %v1638
        %v1746 = vadd.f32 %v1502, %v1640
        %v1747 = vadd.f32 %v1503, %v1643
        %v1748 = vadd.f32 %v1504, %v1645
        %v1749 = vadd.f32 %v1505, %v1648
        %v1750 = vadd.f32 %v1506, %v1650
        %v1751 = vadd.f32 %v1507, %v1653
        %v1752 = vadd.f32 %v1508, %v1655
        %v1753 = vadd.f32 %v1509, %v1658
        %v1754 = vadd.f32 %v1510, %v1660
        %v1755 = vadd.f32 %v1511, %v1663
        %v1756 = vadd.f32 %v1512, %v1665
        %v1757 = vadd.f32 %v1513, %v1668
        %v1758 = vadd.f32 %v1514, %v1670
        %v1759 = vadd.f32 %v1515, %v1673
        %v1760 = vadd.f32 %v1516, %v1675
        %v1761 = vadd.f32 %v1517, %v1678
        %v1762 = vadd.f32 %v1518, %v1680
        %v1763 = vadd.f32 %v1519, %v1683
        %v1764 = vadd.f32 %v1520, %v1685
        %v1765 = vadd.f32 %v1521, %v1688
        %v1766 = vadd.f32 %v1522, %v1690
        %v1767 = vadd.f32 %v1523, %v1693
        %v1768 = vadd.f32 %v1524, %v1695
        %v1769 = vadd.f32 %v1525, %v1698
        %v1770 = vadd.f32 %v1526, %v1700
        %v1771 = vadd.f32 %v1527, %v1703
        %v1772 = vadd.f32 %v1528, %v1705
        %v1773 = vadd.f32 %v1529, %v1708
        %v1774 = vadd.f32 %v1530, %v1710
        %v1775 = vlaneseq
        %v1776 = vshrl.u32 %v1775, 7
        %v1777 = vsub.s32 2, %v1776
        %v1778 = vrot.slane %v348, %v1777
        %v1779 = vmul.f32 %v298, %v1778
        %v1780 = vmul.f32 %v299, %v1778
        %v1781 = vmul.f32 %v300, %v1778
        %v1782 = vmul.f32 %v301, %v1778
        %v1783 = vmul.f32 %v302, %v1778
        %v1784 = vmul.f32 %v303, %v1778
        %v1785 = vmul.f32 %v304, %v1778
        %v1786 = vmul.f32 %v305, %v1778
        %v1787 = vmul.f32 %v306, %v1778
        %v1788 = vmul.f32 %v307, %v1778
        %v1789 = vmul.f32 %v308, %v1778
        %v1790 = vmul.f32 %v309, %v1778
        %v1791 = vmul.f32 %v310, %v1778
        %v1792 = vmul.f32 %v311, %v1778
        %v1793 = vmul.f32 %v312, %v1778
        %v1794 = vmul.f32 %v313, %v1778
        %v1795 = vmul.f32 %v314, %v1778
        %v1796 = vmul.f32 %v315, %v1778
        %v1797 = vmul.f32 %v316, %v1778
        %v1798 = vmul.f32 %v317, %v1778
        %v1799 = vmul.f32 %v318, %v1778
        %v1800 = vmul.f32 %v319, %v1778
        %v1801 = vmul.f32 %v320, %v1778
        %v1802 = vmul.f32 %v321, %v1778
        %v1803 = vmul.f32 %v322, %v1778
        %v1804 = vmul.f32 %v323, %v1778
        %v1805 = vmul.f32 %v324, %v1778
        %v1806 = vmul.f32 %v325, %v1778
        %v1807 = vmul.f32 %v326, %v1778
        %v1808 = vmul.f32 %v327, %v1778
        %v1809 = vmul.f32 %v328, %v1778
        %v1810 = vmul.f32 %v329, %v1778
        %v1811 = vmul.f32 %v330, %v1778
        %v1812 = vmul.f32 %v331, %v1778
        %v1813 = vmul.f32 %v332, %v1778
        %v1814 = vmul.f32 %v333, %v1778
        %v1815 = vmul.f32 %v334, %v1778
        %v1816 = vmul.f32 %v335, %v1778
        %v1817 = vmul.f32 %v336, %v1778
        %v1818 = vmul.f32 %v337, %v1778
        %v1819 = vmul.f32 %v338, %v1778
        %v1820 = vmul.f32 %v339, %v1778
        %v1821 = vmul.f32 %v340, %v1778
        %v1822 = vmul.f32 %v341, %v1778
        %v1823 = vmul.f32 %v342, %v1778
        %v1824 = vmul.f32 %v343, %v1778
        %v1825 = vmul.f32 %v344, %v1778
        %v1826 = vmul.f32 %v345, %v1778
        %v1875 = vrot.slane %v1779, 2
        %v1876 = vrot.slane %v1780, 2
        %v1877 = vsel %vm1386, %v1875, %v1876
        %v1878 = vrot.slane %v1781, 2
        %v1879 = vsel %vm1386, %v1876, %v1878
        %v1880 = vrot.slane %v1782, 2
        %v1881 = vrot.slane %v1783, 2
        %v1882 = vsel %vm1386, %v1880, %v1881
        %v1883 = vrot.slane %v1784, 2
        %v1884 = vsel %vm1386, %v1881, %v1883
        %v1885 = vrot.slane %v1785, 2
        %v1886 = vrot.slane %v1786, 2
        %v1887 = vsel %vm1386, %v1885, %v1886
        %v1888 = vrot.slane %v1787, 2
        %v1889 = vsel %vm1386, %v1886, %v1888
        %v1890 = vrot.slane %v1788, 2
        %v1891 = vrot.slane %v1789, 2
        %v1892 = vsel %vm1386, %v1890, %v1891
        %v1893 = vrot.slane %v1790, 2
        %v1894 = vsel %vm1386, %v1891, %v1893
        %v1895 = vrot.slane %v1791, 2
        %v1896 = vrot.slane %v1792, 2
        %v1897 = vsel %vm1386, %v1895, %v1896
        %v1898 = vrot.slane %v1793, 2
        %v1899 = vsel %vm1386, %v1896, %v1898
        %v1900 = vrot.slane %v1794, 2
        %v1901 = vrot.slane %v1795, 2
        %v1902 = vsel %vm1386, %v1900, %v1901
        %v1903 = vrot.slane %v1796, 2
        %v1904 = vsel %vm1386, %v1901, %v1903
        %v1905 = vrot.slane %v1797, 2
        %v1906 = vrot.slane %v1798, 2
        %v1907 = vsel %vm1386, %v1905, %v1906
        %v1908 = vrot.slane %v1799, 2
        %v1909 = vsel %vm1386, %v1906, %v1908
        %v1910 = vrot.slane %v1800, 2
        %v1911 = vrot.slane %v1801, 2
        %v1912 = vsel %vm1386, %v1910, %v1911
        %v1913 = vrot.slane %v1802, 2
        %v1914 = vsel %vm1386, %v1911, %v1913
        %v1915 = vrot.slane %v1803, 2
        %v1916 = vrot.slane %v1804, 2
        %v1917 = vsel %vm1386, %v1915, %v1916
        %v1918 = vrot.slane %v1805, 2
        %v1919 = vsel %vm1386, %v1916, %v1918
        %v1920 = vrot.slane %v1806, 2
        %v1921 = vrot.slane %v1807, 2
        %v1922 = vsel %vm1386, %v1920, %v1921
        %v1923 = vrot.slane %v1808, 2
        %v1924 = vsel %vm1386, %v1921, %v1923
        %v1925 = vrot.slane %v1809, 2
        %v1926 = vrot.slane %v1810, 2
        %v1927 = vsel %vm1386, %v1925, %v1926
        %v1928 = vrot.slane %v1811, 2
        %v1929 = vsel %vm1386, %v1926, %v1928
        %v1930 = vrot.slane %v1812, 2
        %v1931 = vrot.slane %v1813, 2
        %v1932 = vsel %vm1386, %v1930, %v1931
        %v1933 = vrot.slane %v1814, 2
        %v1934 = vsel %vm1386, %v1931, %v1933
        %v1935 = vrot.slane %v1815, 2
        %v1936 = vrot.slane %v1816, 2
        %v1937 = vsel %vm1386, %v1935, %v1936
        %v1938 = vrot.slane %v1817, 2
        %v1939 = vsel %vm1386, %v1936, %v1938
        %v1940 = vrot.slane %v1818, 2
        %v1941 = vrot.slane %v1819, 2
        %v1942 = vsel %vm1386, %v1940, %v1941
        %v1943 = vrot.slane %v1820, 2
        %v1944 = vsel %vm1386, %v1941, %v1943
        %v1945 = vrot.slane %v1821, 2
        %v1946 = vrot.slane %v1822, 2
        %v1947 = vsel %vm1386, %v1945, %v1946
        %v1948 = vrot.slane %v1823, 2
        %v1949 = vsel %vm1386, %v1946, %v1948
        %v1950 = vrot.slane %v1824, 2
        %v1951 = vrot.slane %v1825, 2
        %v1952 = vsel %vm1386, %v1950, %v1951
        %v1953 = vrot.slane %v1826, 2
        %v1954 = vsel %vm1386, %v1951, %v1953
        %v1987 = vadd.f32 %v1743, %v1877
        %v1988 = vadd.f32 %v1744, %v1879
        %v1989 = vadd.f32 %v1745, %v1882
        %v1990 = vadd.f32 %v1746, %v1884
        %v1991 = vadd.f32 %v1747, %v1887
        %v1992 = vadd.f32 %v1748, %v1889
        %v1993 = vadd.f32 %v1749, %v1892
        %v1994 = vadd.f32 %v1750, %v1894
        %v1995 = vadd.f32 %v1751, %v1897
        %v1996 = vadd.f32 %v1752, %v1899
        %v1997 = vadd.f32 %v1753, %v1902
        %v1998 = vadd.f32 %v1754, %v1904
        %v1999 = vadd.f32 %v1755, %v1907
        %v2000 = vadd.f32 %v1756, %v1909
        %v2001 = vadd.f32 %v1757, %v1912
        %v2002 = vadd.f32 %v1758, %v1914
        %v2003 = vadd.f32 %v1759, %v1917
        %v2004 = vadd.f32 %v1760, %v1919
        %v2005 = vadd.f32 %v1761, %v1922
        %v2006 = vadd.f32 %v1762, %v1924
        %v2007 = vadd.f32 %v1763, %v1927
        %v2008 = vadd.f32 %v1764, %v1929
        %v2009 = vadd.f32 %v1765, %v1932
        %v2010 = vadd.f32 %v1766, %v1934
        %v2011 = vadd.f32 %v1767, %v1937
        %v2012 = vadd.f32 %v1768, %v1939
        %v2013 = vadd.f32 %v1769, %v1942
        %v2014 = vadd.f32 %v1770, %v1944
        %v2015 = vadd.f32 %v1771, %v1947
        %v2016 = vadd.f32 %v1772, %v1949
        %v2017 = vadd.f32 %v1773, %v1952
        %v2018 = vadd.f32 %v1774, %v1954
        %v2019 = vld [vmem:[%s2] sm:$0x1]
        %v2021 = vlaneseq
        %v2022 = vshrl.u32 %v2021, 7
        %v2023 = vsub.s32 0, %v2022
        %v2024 = vrot.slane %v2019, %v2023
        %v2026 = vadd.f32 %v1987, %v2024
        %v2027 = vadd.f32 %v1988, %v2024
        %v2028 = vadd.f32 %v1989, %v2024
        %v2029 = vadd.f32 %v1990, %v2024
        %v2030 = vadd.f32 %v1991, %v2024
        %v2031 = vadd.f32 %v1992, %v2024
        %v2032 = vadd.f32 %v1993, %v2024
        %v2033 = vadd.f32 %v1994, %v2024
        %v2034 = vadd.f32 %v1995, %v2024
        %v2035 = vadd.f32 %v1996, %v2024
        %v2036 = vadd.f32 %v1997, %v2024
        %v2037 = vadd.f32 %v1998, %v2024
        %v2038 = vadd.f32 %v1999, %v2024
        %v2039 = vadd.f32 %v2000, %v2024
        %v2040 = vadd.f32 %v2001, %v2024
        %v2041 = vadd.f32 %v2002, %v2024
        %v2042 = vadd.f32 %v2003, %v2024
        %v2043 = vadd.f32 %v2004, %v2024
        %v2044 = vadd.f32 %v2005, %v2024
        %v2045 = vadd.f32 %v2006, %v2024
        %v2046 = vadd.f32 %v2007, %v2024
        %v2047 = vadd.f32 %v2008, %v2024
        %v2048 = vadd.f32 %v2009, %v2024
        %v2049 = vadd.f32 %v2010, %v2024
        %v2050 = vadd.f32 %v2011, %v2024
        %v2051 = vadd.f32 %v2012, %v2024
        %v2052 = vadd.f32 %v2013, %v2024
        %v2053 = vadd.f32 %v2014, %v2024
        %v2054 = vadd.f32 %v2015, %v2024
        %v2055 = vadd.f32 %v2016, %v2024
        %v2056 = vadd.f32 %v2017, %v2024
        %v2057 = vadd.f32 %v2018, %v2024
        %vm2058 = vcmp.ge.f32.partialorder %v2026, 0.0
        %vm2059 = vcmp.ge.f32.partialorder %v2027, 0.0
        %vm2060 = vcmp.ge.f32.partialorder %v2028, 0.0
        %vm2061 = vcmp.ge.f32.partialorder %v2029, 0.0
        %vm2062 = vcmp.ge.f32.partialorder %v2030, 0.0
        %vm2063 = vcmp.ge.f32.partialorder %v2031, 0.0
        %vm2064 = vcmp.ge.f32.partialorder %v2032, 0.0
        %vm2065 = vcmp.ge.f32.partialorder %v2033, 0.0
        %vm2066 = vcmp.ge.f32.partialorder %v2034, 0.0
        %vm2067 = vcmp.ge.f32.partialorder %v2035, 0.0
        %vm2068 = vcmp.ge.f32.partialorder %v2036, 0.0
        %vm2069 = vcmp.ge.f32.partialorder %v2037, 0.0
        %vm2070 = vcmp.ge.f32.partialorder %v2038, 0.0
        %vm2071 = vcmp.ge.f32.partialorder %v2039, 0.0
        %vm2072 = vcmp.ge.f32.partialorder %v2040, 0.0
        %vm2073 = vcmp.ge.f32.partialorder %v2041, 0.0
        %vm2074 = vcmp.ge.f32.partialorder %v2042, 0.0
        %vm2075 = vcmp.ge.f32.partialorder %v2043, 0.0
        %vm2076 = vcmp.ge.f32.partialorder %v2044, 0.0
        %vm2077 = vcmp.ge.f32.partialorder %v2045, 0.0
        %vm2078 = vcmp.ge.f32.partialorder %v2046, 0.0
        %vm2079 = vcmp.ge.f32.partialorder %v2047, 0.0
        %vm2080 = vcmp.ge.f32.partialorder %v2048, 0.0
        %vm2081 = vcmp.ge.f32.partialorder %v2049, 0.0
        %vm2082 = vcmp.ge.f32.partialorder %v2050, 0.0
        %vm2083 = vcmp.ge.f32.partialorder %v2051, 0.0
        %vm2084 = vcmp.ge.f32.partialorder %v2052, 0.0
        %vm2085 = vcmp.ge.f32.partialorder %v2053, 0.0
        %vm2086 = vcmp.ge.f32.partialorder %v2054, 0.0
        %vm2087 = vcmp.ge.f32.partialorder %v2055, 0.0
        %vm2088 = vcmp.ge.f32.partialorder %v2056, 0.0
        %vm2089 = vcmp.ge.f32.partialorder %v2057, 0.0
        %v2090 = vld [vmem:[%s3] sm:$0x1]
        %v2092 = vlaneseq
        %v2093 = vshrl.u32 %v2092, 7
        %v2094 = vsub.s32 0, %v2093
        %v2095 = vrot.slane %v2090, %v2094
        %v2097 = vmul.f32 %v2095, %v2026
        %v2098 = vmul.f32 %v2095, %v2027
        %v2099 = vmul.f32 %v2095, %v2028
        %v2100 = vmul.f32 %v2095, %v2029
        %v2101 = vmul.f32 %v2095, %v2030
        %v2102 = vmul.f32 %v2095, %v2031
        %v2103 = vmul.f32 %v2095, %v2032
        %v2104 = vmul.f32 %v2095, %v2033
        %v2105 = vmul.f32 %v2095, %v2034
        %v2106 = vmul.f32 %v2095, %v2035
        %v2107 = vmul.f32 %v2095, %v2036
        %v2108 = vmul.f32 %v2095, %v2037
        %v2109 = vmul.f32 %v2095, %v2038
        %v2110 = vmul.f32 %v2095, %v2039
        %v2111 = vmul.f32 %v2095, %v2040
        %v2112 = vmul.f32 %v2095, %v2041
        %v2113 = vmul.f32 %v2095, %v2042
        %v2114 = vmul.f32 %v2095, %v2043
        %v2115 = vmul.f32 %v2095, %v2044
        %v2116 = vmul.f32 %v2095, %v2045
        %v2117 = vmul.f32 %v2095, %v2046
        %v2118 = vmul.f32 %v2095, %v2047
        %v2119 = vmul.f32 %v2095, %v2048
        %v2120 = vmul.f32 %v2095, %v2049
        %v2121 = vmul.f32 %v2095, %v2050
        %v2122 = vmul.f32 %v2095, %v2051
        %v2123 = vmul.f32 %v2095, %v2052
        %v2124 = vmul.f32 %v2095, %v2053
        %v2125 = vmul.f32 %v2095, %v2054
        %v2126 = vmul.f32 %v2095, %v2055
        %v2127 = vmul.f32 %v2095, %v2056
        %v2128 = vmul.f32 %v2095, %v2057
        %v2129 = vsel %vm2058, %v2026, %v2097
        %v2130 = vsel %vm2059, %v2027, %v2098
        %v2131 = vsel %vm2060, %v2028, %v2099
        %v2132 = vsel %vm2061, %v2029, %v2100
        %v2133 = vsel %vm2062, %v2030, %v2101
        %v2134 = vsel %vm2063, %v2031, %v2102
        %v2135 = vsel %vm2064, %v2032, %v2103
        %v2136 = vsel %vm2065, %v2033, %v2104
        %v2137 = vsel %vm2066, %v2034, %v2105
        %v2138 = vsel %vm2067, %v2035, %v2106
        %v2139 = vsel %vm2068, %v2036, %v2107
        %v2140 = vsel %vm2069, %v2037, %v2108
        %v2141 = vsel %vm2070, %v2038, %v2109
        %v2142 = vsel %vm2071, %v2039, %v2110
        %v2143 = vsel %vm2072, %v2040, %v2111
        %v2144 = vsel %vm2073, %v2041, %v2112
        %v2145 = vsel %vm2074, %v2042, %v2113
        %v2146 = vsel %vm2075, %v2043, %v2114
        %v2147 = vsel %vm2076, %v2044, %v2115
        %v2148 = vsel %vm2077, %v2045, %v2116
        %v2149 = vsel %vm2078, %v2046, %v2117
        %v2150 = vsel %vm2079, %v2047, %v2118
        %v2151 = vsel %vm2080, %v2048, %v2119
        %v2152 = vsel %vm2081, %v2049, %v2120
        %v2153 = vsel %vm2082, %v2050, %v2121
        %v2154 = vsel %vm2083, %v2051, %v2122
        %v2155 = vsel %vm2084, %v2052, %v2123
        %v2156 = vsel %vm2085, %v2053, %v2124
        %v2157 = vsel %vm2086, %v2054, %v2125
        %v2158 = vsel %vm2087, %v2055, %v2126
        %v2159 = vsel %vm2088, %v2056, %v2127
        %v2160 = vsel %vm2089, %v2057, %v2128
        %v2161 = vld [vmem:[%s4] sm:$0xff]
        %v2162 = vld [vmem:[%s5] sm:$0x1]
        %v2164 = vlaneseq
        %v2165 = vshrl.u32 %v2164, 7
        %v2166 = vsub.s32 0, %v2165
        %v2167 = vrot.slane %v2162, %v2166
        %vm2169 = vcmask 64512
        %v2171 = vsel %vm2169, %v2129, 0
        %v2174 = vsel %vm2169, %v2130, 0
        %v2177 = vsel %vm2169, %v2131, 0
        %v2180 = vsel %vm2169, %v2132, 0
        %v2183 = vsel %vm2169, %v2133, 0
        %v2186 = vsel %vm2169, %v2134, 0
        %v2189 = vsel %vm2169, %v2135, 0
        %v2192 = vsel %vm2169, %v2136, 0
        %v2195 = vsel %vm2169, %v2137, 0
        %v2198 = vsel %vm2169, %v2138, 0
        %v2201 = vsel %vm2169, %v2139, 0
        %v2204 = vsel %vm2169, %v2140, 0
        %v2207 = vsel %vm2169, %v2141, 0
        %v2210 = vsel %vm2169, %v2142, 0
        %v2213 = vsel %vm2169, %v2143, 0
        %v2216 = vsel %vm2169, %v2144, 0
        %v2219 = vsel %vm2169, %v2145, 0
        %v2222 = vsel %vm2169, %v2146, 0
        %v2225 = vsel %vm2169, %v2147, 0
        %v2228 = vsel %vm2169, %v2148, 0
        %v2231 = vsel %vm2169, %v2149, 0
        %v2234 = vsel %vm2169, %v2150, 0
        %v2237 = vsel %vm2169, %v2151, 0
        %v2240 = vsel %vm2169, %v2152, 0
        %v2243 = vsel %vm2169, %v2153, 0
        %v2246 = vsel %vm2169, %v2154, 0
        %v2249 = vsel %vm2169, %v2155, 0
        %v2252 = vsel %vm2169, %v2156, 0
        %v2255 = vsel %vm2169, %v2157, 0
        %v2258 = vsel %vm2169, %v2158, 0
        %v2261 = vsel %vm2169, %v2159, 0
        %v2264 = vsel %vm2169, %v2160, 0
        %2266 = vmatprep.subr.mxu0 0.0
        %2267 = vmatpush1.msra.mxu0 %v2161
        %2268 = vmatprep.subr.mxu0 0.0
        %2269 = vmatpush1.msra.mxu0 0.0
        %2270 = vmatprep.subr.mxu0 0.0
        %2271 = vmatpush1.msra.mxu0 0.0
        %2272 = vmatprep.subr.mxu0 0.0
        %2273 = vmatpush1.msra.mxu0 0.0
        %2274 = vmatprep.subr.mxu0 0.0
        %2275 = vmatpush1.msra.mxu0 0.0
        %2276 = vmatprep.subr.mxu0 0.0
        %2277 = vmatpush1.msra.mxu0 0.0
        %2278 = vmatprep.subr.mxu0 0.0
        %2279 = vmatpush1.msra.mxu0 0.0
        %2280 = vmatprep.subr.mxu0 0.0
        %2281 = vmatpush1.msra.mxu0 0.0
        %2282 = vmatprep.subr.mxu0 0.0
        %2283 = vmatpush1.msra.mxu0 0.0
        %2284 = vmatprep.subr.mxu0 0.0
        %2285 = vmatpush1.msra.mxu0 0.0
        %2286 = vmatprep.subr.mxu0 0.0
        %2287 = vmatpush1.msra.mxu0 0.0
        %2288 = vmatprep.subr.mxu0 0.0
        %2289 = vmatpush1.msra.mxu0 0.0
        %2290 = vmatprep.subr.mxu0 0.0
        %2291 = vmatpush1.msra.mxu0 0.0
        %2292 = vmatprep.subr.mxu0 0.0
        %2293 = vmatpush1.msra.mxu0 0.0
        %2294 = vmatprep.subr.mxu0 0.0
        %2295 = vmatpush1.msra.mxu0 0.0
        %2296 = vmatprep.subr.mxu0 0.0
        %2297 = vmatpush1.msra.mxu0 0.0
        %2298 = vmatprep.subr.mxu0 0.0
        %2299 = vmatpush1.msra.mxu0 0.0
        %2300 = vmatprep.subr.mxu0 0.0
        %2301 = vmatpush1.msra.mxu0 0.0
        %2302 = vmatprep.subr.mxu0 0.0
        %2303 = vmatpush1.msra.mxu0 0.0
        %2304 = vmatprep.subr.mxu0 0.0
        %2305 = vmatpush1.msra.mxu0 0.0
        %2306 = vmatprep.subr.mxu0 0.0
        %2307 = vmatpush1.msra.mxu0 0.0
        %2308 = vmatprep.subr.mxu0 0.0
        %2309 = vmatpush1.msra.mxu0 0.0
        %2310 = vmatprep.subr.mxu0 0.0
        %2311 = vmatpush1.msra.mxu0 0.0
        %2312 = vmatprep.subr.mxu0 0.0
        %2313 = vmatpush1.msra.mxu0 0.0
        %2314 = vmatprep.subr.mxu0 0.0
        %2315 = vmatpush1.msra.mxu0 0.0
        %2316 = vmatprep.subr.mxu0 0.0
        %2317 = vmatpush1.msra.mxu0 0.0
        %2318 = vmatprep.subr.mxu0 0.0
        %2319 = vmatpush1.msra.mxu0 0.0
        %2320 = vmatprep.subr.mxu0 0.0
        %2321 = vmatpush1.msra.mxu0 0.0
        %2322 = vmatprep.subr.mxu0 0.0
        %2323 = vmatpush1.msra.mxu0 0.0
        %2324 = vmatprep.subr.mxu0 0.0
        %2325 = vmatpush1.msra.mxu0 0.0
        %2326 = vmatprep.subr.mxu0 0.0
        %2327 = vmatpush1.msra.mxu0 0.0
        %2328 = vmatprep.subr.mxu0 0.0
        %2329 = vmatpush1.msra.mxu0 0.0
        %2330 = vmatprep.mubr.f32.mxu0 0.0
        %2331 = vmatmul.mubr.f32.gmra.mrb[0].mxu0 %v2171
        %v2332 = vpop.f32.mrb[0].mxu0
        %v2333 = vadd.f32 %v2167, %v2332
        %v2334 = vpop.f32.mrb[0].mxu0
        %2335 = vmatprep.mubr.f32.mxu0 0.0
        %2336 = vmatmul.mubr.f32.gmra.mrb[0].mxu0 %v2174
        %v2337 = vpop.f32.mrb[0].mxu0
        %v2338 = vadd.f32 %v2167, %v2337
        %v2339 = vpop.f32.mrb[0].mxu0
        %2340 = vmatprep.mubr.f32.mxu0 0.0
        %2341 = vmatmul.mubr.f32.gmra.mrb[0].mxu0 %v2177
        %v2342 = vpop.f32.mrb[0].mxu0
        %v2343 = vadd.f32 %v2167, %v2342
        %v2344 = vpop.f32.mrb[0].mxu0
        %2345 = vmatprep.mubr.f32.mxu0 0.0
        %2346 = vmatmul.mubr.f32.gmra.mrb[0].mxu0 %v2180
        %v2347 = vpop.f32.mrb[0].mxu0
        %v2348 = vadd.f32 %v2167, %v2347
        %v2349 = vpop.f32.mrb[0].mxu0
        %2350 = vmatprep.mubr.f32.mxu0 0.0
        %2351 = vmatmul.mubr.f32.gmra.mrb[0].mxu0 %v2183
        %v2352 = vpop.f32.mrb[0].mxu0
        %v2353 = vadd.f32 %v2167, %v2352
        %v2354 = vpop.f32.mrb[0].mxu0
        %2355 = vmatprep.mubr.f32.mxu0 0.0
        %2356 = vmatmul.mubr.f32.gmra.mrb[0].mxu0 %v2186
        %v2357 = vpop.f32.mrb[0].mxu0
        %v2358 = vadd.f32 %v2167, %v2357
        %v2359 = vpop.f32.mrb[0].mxu0
        %2360 = vmatprep.mubr.f32.mxu0 0.0
        %2361 = vmatmul.mubr.f32.gmra.mrb[0].mxu0 %v2189
        %v2362 = vpop.f32.mrb[0].mxu0
        %v2363 = vadd.f32 %v2167, %v2362
        %v2364 = vpop.f32.mrb[0].mxu0
        %2365 = vmatprep.mubr.f32.mxu0 0.0
        %2366 = vmatmul.mubr.f32.gmra.mrb[0].mxu0 %v2192
        %v2367 = vpop.f32.mrb[0].mxu0
        %v2368 = vadd.f32 %v2167, %v2367
        %v2369 = vpop.f32.mrb[0].mxu0
        %2370 = vmatprep.mubr.f32.mxu0 0.0
        %2371 = vmatmul.mubr.f32.gmra.mrb[0].mxu0 %v2195
        %v2372 = vpop.f32.mrb[0].mxu0
        %v2373 = vadd.f32 %v2167, %v2372
        %v2374 = vpop.f32.mrb[0].mxu0
        %2375 = vmatprep.mubr.f32.mxu0 0.0
        %2376 = vmatmul.mubr.f32.gmra.mrb[0].mxu0 %v2198
        %v2377 = vpop.f32.mrb[0].mxu0
        %v2378 = vadd.f32 %v2167, %v2377
        %v2379 = vpop.f32.mrb[0].mxu0
        %2380 = vmatprep.mubr.f32.mxu0 0.0
        %2381 = vmatmul.mubr.f32.gmra.mrb[0].mxu0 %v2201
        %v2382 = vpop.f32.mrb[0].mxu0
        %v2383 = vadd.f32 %v2167, %v2382
        %v2384 = vpop.f32.mrb[0].mxu0
        %2385 = vmatprep.mubr.f32.mxu0 0.0
        %2386 = vmatmul.mubr.f32.gmra.mrb[0].mxu0 %v2204
        %v2387 = vpop.f32.mrb[0].mxu0
        %v2388 = vadd.f32 %v2167, %v2387
        %v2389 = vpop.f32.mrb[0].mxu0
        %2390 = vmatprep.mubr.f32.mxu0 0.0
        %2391 = vmatmul.mubr.f32.gmra.mrb[0].mxu0 %v2207
        %v2392 = vpop.f32.mrb[0].mxu0
        %v2393 = vadd.f32 %v2167, %v2392
        %v2394 = vpop.f32.mrb[0].mxu0
        %2395 = vmatprep.mubr.f32.mxu0 0.0
        %2396 = vmatmul.mubr.f32.gmra.mrb[0].mxu0 %v2210
        %v2397 = vpop.f32.mrb[0].mxu0
        %v2398 = vadd.f32 %v2167, %v2397
        %v2399 = vpop.f32.mrb[0].mxu0
        %2400 = vmatprep.mubr.f32.mxu0 0.0
        %2401 = vmatmul.mubr.f32.gmra.mrb[0].mxu0 %v2213
        %v2402 = vpop.f32.mrb[0].mxu0
        %v2403 = vadd.f32 %v2167, %v2402
        %v2404 = vpop.f32.mrb[0].mxu0
        %2405 = vmatprep.mubr.f32.mxu0 0.0
        %2406 = vmatmul.mubr.f32.gmra.mrb[0].mxu0 %v2216
        %v2407 = vpop.f32.mrb[0].mxu0
        %v2408 = vadd.f32 %v2167, %v2407
        %v2409 = vpop.f32.mrb[0].mxu0
        %2410 = vmatprep.mubr.f32.mxu0 0.0
        %2411 = vmatmul.mubr.f32.gmra.mrb[0].mxu0 %v2219
        %v2412 = vpop.f32.mrb[0].mxu0
        %v2413 = vadd.f32 %v2167, %v2412
        %v2414 = vpop.f32.mrb[0].mxu0
        %2415 = vmatprep.mubr.f32.mxu0 0.0
        %2416 = vmatmul.mubr.f32.gmra.mrb[0].mxu0 %v2222
        %v2417 = vpop.f32.mrb[0].mxu0
        %v2418 = vadd.f32 %v2167, %v2417
        %v2419 = vpop.f32.mrb[0].mxu0
        %2420 = vmatprep.mubr.f32.mxu0 0.0
        %2421 = vmatmul.mubr.f32.gmra.mrb[0].mxu0 %v2225
        %v2422 = vpop.f32.mrb[0].mxu0
        %v2423 = vadd.f32 %v2167, %v2422
        %v2424 = vpop.f32.mrb[0].mxu0
        %2425 = vmatprep.mubr.f32.mxu0 0.0
        %2426 = vmatmul.mubr.f32.gmra.mrb[0].mxu0 %v2228
        %v2427 = vpop.f32.mrb[0].mxu0
        %v2428 = vadd.f32 %v2167, %v2427
        %v2429 = vpop.f32.mrb[0].mxu0
        %2430 = vmatprep.mubr.f32.mxu0 0.0
        %2431 = vmatmul.mubr.f32.gmra.mrb[0].mxu0 %v2231
        %v2432 = vpop.f32.mrb[0].mxu0
        %v2433 = vadd.f32 %v2167, %v2432
        %v2434 = vpop.f32.mrb[0].mxu0
        %2435 = vmatprep.mubr.f32.mxu0 0.0
        %2436 = vmatmul.mubr.f32.gmra.mrb[0].mxu0 %v2234
        %v2437 = vpop.f32.mrb[0].mxu0
        %v2438 = vadd.f32 %v2167, %v2437
        %v2439 = vpop.f32.mrb[0].mxu0
        %2440 = vmatprep.mubr.f32.mxu0 0.0
        %2441 = vmatmul.mubr.f32.gmra.mrb[0].mxu0 %v2237
        %v2442 = vpop.f32.mrb[0].mxu0
        %v2443 = vadd.f32 %v2167, %v2442
        %v2444 = vpop.f32.mrb[0].mxu0
        %2445 = vmatprep.mubr.f32.mxu0 0.0
        %2446 = vmatmul.mubr.f32.gmra.mrb[0].mxu0 %v2240
        %v2447 = vpop.f32.mrb[0].mxu0
        %v2448 = vadd.f32 %v2167, %v2447
        %v2449 = vpop.f32.mrb[0].mxu0
        %2450 = vmatprep.mubr.f32.mxu0 0.0
        %2451 = vmatmul.mubr.f32.gmra.mrb[0].mxu0 %v2243
        %v2452 = vpop.f32.mrb[0].mxu0
        %v2453 = vadd.f32 %v2167, %v2452
        %v2454 = vpop.f32.mrb[0].mxu0
        %2455 = vmatprep.mubr.f32.mxu0 0.0
        %2456 = vmatmul.mubr.f32.gmra.mrb[0].mxu0 %v2246
        %v2457 = vpop.f32.mrb[0].mxu0
        %v2458 = vadd.f32 %v2167, %v2457
        %v2459 = vpop.f32.mrb[0].mxu0
        %2460 = vmatprep.mubr.f32.mxu0 0.0
        %2461 = vmatmul.mubr.f32.gmra.mrb[0].mxu0 %v2249
        %v2462 = vpop.f32.mrb[0].mxu0
        %v2463 = vadd.f32 %v2167, %v2462
        %v2464 = vpop.f32.mrb[0].mxu0
        %2465 = vmatprep.mubr.f32.mxu0 0.0
        %2466 = vmatmul.mubr.f32.gmra.mrb[0].mxu0 %v2252
        %v2467 = vpop.f32.mrb[0].mxu0
        %v2468 = vadd.f32 %v2167, %v2467
        %v2469 = vpop.f32.mrb[0].mxu0
        %2470 = vmatprep.mubr.f32.mxu0 0.0
        %2471 = vmatmul.mubr.f32.gmra.mrb[0].mxu0 %v2255
        %v2472 = vpop.f32.mrb[0].mxu0
        %v2473 = vadd.f32 %v2167, %v2472
        %v2474 = vpop.f32.mrb[0].mxu0
        %2475 = vmatprep.mubr.f32.mxu0 0.0
        %2476 = vmatmul.mubr.f32.gmra.mrb[0].mxu0 %v2258
        %v2477 = vpop.f32.mrb[0].mxu0
        %v2478 = vadd.f32 %v2167, %v2477
        %v2479 = vpop.f32.mrb[0].mxu0
        %2480 = vmatprep.mubr.f32.mxu0 0.0
        %2481 = vmatmul.mubr.f32.gmra.mrb[0].mxu0 %v2261
        %v2482 = vpop.f32.mrb[0].mxu0
        %v2483 = vadd.f32 %v2167, %v2482
        %v2484 = vpop.f32.mrb[0].mxu0
        %2485 = vmatprep.mubr.f32.mxu0 0.0
        %2486 = vmatmul.mubr.f32.gmra.mrb[0].mxu0 %v2264
        %v2487 = vpop.f32.mrb[0].mxu0
        %v2488 = vadd.f32 %v2167, %v2487
        %v2489 = vpop.f32.mrb[0].mxu0
        %2490 = vdwg.mxu0
        %vm2491 = vcmp.ge.f32.partialorder %v2333, 0.0
        %vm2492 = vcmp.ge.f32.partialorder %v2338, 0.0
        %vm2493 = vcmp.ge.f32.partialorder %v2343, 0.0
        %vm2494 = vcmp.ge.f32.partialorder %v2348, 0.0
        %vm2495 = vcmp.ge.f32.partialorder %v2353, 0.0
        %vm2496 = vcmp.ge.f32.partialorder %v2358, 0.0
        %vm2497 = vcmp.ge.f32.partialorder %v2363, 0.0
        %vm2498 = vcmp.ge.f32.partialorder %v2368, 0.0
        %vm2499 = vcmp.ge.f32.partialorder %v2373, 0.0
        %vm2500 = vcmp.ge.f32.partialorder %v2378, 0.0
        %vm2501 = vcmp.ge.f32.partialorder %v2383, 0.0
        %vm2502 = vcmp.ge.f32.partialorder %v2388, 0.0
        %vm2503 = vcmp.ge.f32.partialorder %v2393, 0.0
        %vm2504 = vcmp.ge.f32.partialorder %v2398, 0.0
        %vm2505 = vcmp.ge.f32.partialorder %v2403, 0.0
        %vm2506 = vcmp.ge.f32.partialorder %v2408, 0.0
        %vm2507 = vcmp.ge.f32.partialorder %v2413, 0.0
        %vm2508 = vcmp.ge.f32.partialorder %v2418, 0.0
        %vm2509 = vcmp.ge.f32.partialorder %v2423, 0.0
        %vm2510 = vcmp.ge.f32.partialorder %v2428, 0.0
        %vm2511 = vcmp.ge.f32.partialorder %v2433, 0.0
        %vm2512 = vcmp.ge.f32.partialorder %v2438, 0.0
        %vm2513 = vcmp.ge.f32.partialorder %v2443, 0.0
        %vm2514 = vcmp.ge.f32.partialorder %v2448, 0.0
        %vm2515 = vcmp.ge.f32.partialorder %v2453, 0.0
        %vm2516 = vcmp.ge.f32.partialorder %v2458, 0.0
        %vm2517 = vcmp.ge.f32.partialorder %v2463, 0.0
        %vm2518 = vcmp.ge.f32.partialorder %v2468, 0.0
        %vm2519 = vcmp.ge.f32.partialorder %v2473, 0.0
        %vm2520 = vcmp.ge.f32.partialorder %v2478, 0.0
        %vm2521 = vcmp.ge.f32.partialorder %v2483, 0.0
        %vm2522 = vcmp.ge.f32.partialorder %v2488, 0.0
        %v2523 = vld [vmem:[%s6] sm:$0x1]
        %v2525 = vlaneseq
        %v2526 = vshrl.u32 %v2525, 7
        %v2527 = vsub.s32 0, %v2526
        %v2528 = vrot.slane %v2523, %v2527
        %v2530 = vmul.f32 %v2528, %v2333
        %v2531 = vmul.f32 %v2528, %v2338
        %v2532 = vmul.f32 %v2528, %v2343
        %v2533 = vmul.f32 %v2528, %v2348
        %v2534 = vmul.f32 %v2528, %v2353
        %v2535 = vmul.f32 %v2528, %v2358
        %v2536 = vmul.f32 %v2528, %v2363
        %v2537 = vmul.f32 %v2528, %v2368
        %v2538 = vmul.f32 %v2528, %v2373
        %v2539 = vmul.f32 %v2528, %v2378
        %v2540 = vmul.f32 %v2528, %v2383
        %v2541 = vmul.f32 %v2528, %v2388
        %v2542 = vmul.f32 %v2528, %v2393
        %v2543 = vmul.f32 %v2528, %v2398
        %v2544 = vmul.f32 %v2528, %v2403
        %v2545 = vmul.f32 %v2528, %v2408
        %v2546 = vmul.f32 %v2528, %v2413
        %v2547 = vmul.f32 %v2528, %v2418
        %v2548 = vmul.f32 %v2528, %v2423
        %v2549 = vmul.f32 %v2528, %v2428
        %v2550 = vmul.f32 %v2528, %v2433
        %v2551 = vmul.f32 %v2528, %v2438
        %v2552 = vmul.f32 %v2528, %v2443
        %v2553 = vmul.f32 %v2528, %v2448
        %v2554 = vmul.f32 %v2528, %v2453
        %v2555 = vmul.f32 %v2528, %v2458
        %v2556 = vmul.f32 %v2528, %v2463
        %v2557 = vmul.f32 %v2528, %v2468
        %v2558 = vmul.f32 %v2528, %v2473
        %v2559 = vmul.f32 %v2528, %v2478
        %v2560 = vmul.f32 %v2528, %v2483
        %v2561 = vmul.f32 %v2528, %v2488
        %v2562 = vsel %vm2491, %v2333, %v2530
        %v2563 = vsel %vm2492, %v2338, %v2531
        %v2564 = vsel %vm2493, %v2343, %v2532
        %v2565 = vsel %vm2494, %v2348, %v2533
        %v2566 = vsel %vm2495, %v2353, %v2534
        %v2567 = vsel %vm2496, %v2358, %v2535
        %v2568 = vsel %vm2497, %v2363, %v2536
        %v2569 = vsel %vm2498, %v2368, %v2537
        %v2570 = vsel %vm2499, %v2373, %v2538
        %v2571 = vsel %vm2500, %v2378, %v2539
        %v2572 = vsel %vm2501, %v2383, %v2540
        %v2573 = vsel %vm2502, %v2388, %v2541
        %v2574 = vsel %vm2503, %v2393, %v2542
        %v2575 = vsel %vm2504, %v2398, %v2543
        %v2576 = vsel %vm2505, %v2403, %v2544
        %v2577 = vsel %vm2506, %v2408, %v2545
        %v2578 = vsel %vm2507, %v2413, %v2546
        %v2579 = vsel %vm2508, %v2418, %v2547
        %v2580 = vsel %vm2509, %v2423, %v2548
        %v2581 = vsel %vm2510, %v2428, %v2549
        %v2582 = vsel %vm2511, %v2433, %v2550
        %v2583 = vsel %vm2512, %v2438, %v2551
        %v2584 = vsel %vm2513, %v2443, %v2552
        %v2585 = vsel %vm2514, %v2448, %v2553
        %v2586 = vsel %vm2515, %v2453, %v2554
        %v2587 = vsel %vm2516, %v2458, %v2555
        %v2588 = vsel %vm2517, %v2463, %v2556
        %v2589 = vsel %vm2518, %v2468, %v2557
        %v2590 = vsel %vm2519, %v2473, %v2558
        %v2591 = vsel %vm2520, %v2478, %v2559
        %v2592 = vsel %vm2521, %v2483, %v2560
        %v2593 = vsel %vm2522, %v2488, %v2561
        %vm2594 = vcmask 130048
        %2595 = vst.msk [vmem:[%s285] sm:$0xff] %vm2594, %v2562
        %2596 = vst.msk [vmem:[%s285 + $0x8] sm:$0xff] %vm2594, %v2563
        %2597 = vst.msk [vmem:[%s285 + $0x10] sm:$0xff] %vm2594, %v2564
        %2598 = vst.msk [vmem:[%s285 + $0x18] sm:$0xff] %vm2594, %v2565
        %2599 = vst.msk [vmem:[%s285 + $0x20] sm:$0xff] %vm2594, %v2566
        %2600 = vst.msk [vmem:[%s285 + $0x28] sm:$0xff] %vm2594, %v2567
        %2601 = vst.msk [vmem:[%s285 + $0x30] sm:$0xff] %vm2594, %v2568
        %2602 = vst.msk [vmem:[%s285 + $0x38] sm:$0xff] %vm2594, %v2569
        %2603 = vst.msk [vmem:[%s285 + $0x40] sm:$0xff] %vm2594, %v2570
        %2604 = vst.msk [vmem:[%s285 + $0x48] sm:$0xff] %vm2594, %v2571
        %2605 = vst.msk [vmem:[%s285 + $0x50] sm:$0xff] %vm2594, %v2572
        %2606 = vst.msk [vmem:[%s285 + $0x58] sm:$0xff] %vm2594, %v2573
        %2607 = vst.msk [vmem:[%s285 + $0x60] sm:$0xff] %vm2594, %v2574
        %2608 = vst.msk [vmem:[%s285 + $0x68] sm:$0xff] %vm2594, %v2575
        %2609 = vst.msk [vmem:[%s285 + $0x70] sm:$0xff] %vm2594, %v2576
        %2610 = vst.msk [vmem:[%s285 + $0x78] sm:$0xff] %vm2594, %v2577
        %2611 = vst.msk [vmem:[%s285 + $0x80] sm:$0xff] %vm2594, %v2578
        %2612 = vst.msk [vmem:[%s285 + $0x88] sm:$0xff] %vm2594, %v2579
        %2613 = vst.msk [vmem:[%s285 + $0x90] sm:$0xff] %vm2594, %v2580
        %2614 = vst.msk [vmem:[%s285 + $0x98] sm:$0xff] %vm2594, %v2581
        %2615 = vst.msk [vmem:[%s285 + $0xa0] sm:$0xff] %vm2594, %v2582
        %2616 = vst.msk [vmem:[%s285 + $0xa8] sm:$0xff] %vm2594, %v2583
        %2617 = vst.msk [vmem:[%s285 + $0xb0] sm:$0xff] %vm2594, %v2584
        %2618 = vst.msk [vmem:[%s285 + $0xb8] sm:$0xff] %vm2594, %v2585
        %2619 = vst.msk [vmem:[%s285 + $0xc0] sm:$0xff] %vm2594, %v2586
        %2620 = vst.msk [vmem:[%s285 + $0xc8] sm:$0xff] %vm2594, %v2587
        %2621 = vst.msk [vmem:[%s285 + $0xd0] sm:$0xff] %vm2594, %v2588
        %2622 = vst.msk [vmem:[%s285 + $0xd8] sm:$0xff] %vm2594, %v2589
        %2623 = vst.msk [vmem:[%s285 + $0xe0] sm:$0xff] %vm2594, %v2590
        %2624 = vst.msk [vmem:[%s285 + $0xe8] sm:$0xff] %vm2594, %v2591
        %2625 = vst.msk [vmem:[%s285 + $0xf0] sm:$0xff] %vm2594, %v2592
        %2626 = vst.msk [vmem:[%s285 + $0xf8] sm:$0xff] %vm2594, %v2593
        %s2627 = sand.u32 %s195, 1
        %s2628 = scalar_lea.sflag [#allocation3], %s2627
        %s2629 = sand.u32 %s195, 1
        %s2630 = smul.addr %s2629, 256
        %s2631 = scalar_lea.vmem [#allocation2], %s2630
        // Predicated region
        $region49: #{tpu_custom_call.1} parent=47 // pred_check
          %p2632 = pneg %p205
        $region50: #{tpu_custom_call.1} parent=47 // pred_check_branch
          %2634 = sbr.rel (%p2632) target = $region52
        $region51: #{tpu_custom_call.1} parent=47 // pred_region
          %s2635 = smul.u32 16, %s26
          %s2637 = ssub.s32 4096, 4096
          %2638 = vsyncadd %s2628, %s2637
          %s2639 = smul.addr %s2635, 2
          %s2640 = smul.addr %s25, 32
          %s2641 = sadd.s32 %s2639, %s2640
          %s2642 = smul.addr %s2641, 128
          %s2643 = scalar_lea.hbm %s7, %s2642
          %s2644 = sshll.u32 %s2631, 4
          %s2645 = int_to_ptr.vmem [resolvable:$true] %s2644
          %2650 = dma.vmem_to_hbm [thread:$0]  %s2645, 4096, %s2643, %s2628, 128, 128, 8
        $region52: #{tpu_custom_call.1} parent=47 // pred_fallthru
          _
      $region48: #{tpu_custom_call.1} parent=5 // pred_fallthru
        _
      %p2651 = scmp.le.s32.totalorder 2, %s16
      // Predicated region
      $region53: #{tpu_custom_call.1} parent=5 // pred_check
        %p2652 = pneg %p2651
      $region54: #{tpu_custom_call.1} parent=5 // pred_check_branch
        %2654 = sbr.rel (%p2652) target = $region56
      $region55: #{tpu_custom_call.1} parent=5 // pred_region
        %s2655 = ssub.s32 %s16, 2
        // Predicated region
        $region57: #{tpu_custom_call.1} parent=55 // pred_check
          %p2656 = pneg %p211
        $region58: #{tpu_custom_call.1} parent=55 // pred_check_branch
          %2658 = sbr.rel (%p2656) target = $region60
        $region59: #{tpu_custom_call.1} parent=55 // pred_region
          %s2659 = sand.u32 %s196, 1
          %s2660 = scalar_lea.sflag [#allocation3], %s2659
          %s2661 = sand.u32 %s196, 1
          %s2662 = smul.addr %s2661, 256
          %s2663 = scalar_lea.vmem [#allocation2], %s2662
          %2664 = dma.done %s2660, 4096
        $region60: #{tpu_custom_call.1} parent=55 // pred_fallthru
          _
      $region56: #{tpu_custom_call.1} parent=5 // pred_fallthru
        _
    $region6: #{tpu_custom_call.1} parent=1 // loop_footer
      %s20 = sadd.s32 1, %s16
    $region7: #{tpu_custom_call.1} parent=1 // loop_footer_branch
      %15 = sbr.rel target = $region3
    $region8: #{tpu_custom_call.1} parent=1 // loop_exit
      _
    %2665 = vsyncpa [#allocation3], 1
    %s2666 = scalar_lea.sflag [#allocation3], 1
    %2667 = vsyncpa %s2666, 1

</llo_original>
